<compile_context>
chip_gen: v5e
topology: v5e:2x2
jax: 0.10.0
libtpu: 0.0.40
codegen_flags: <defaults>
</compile_context>

<pallas_src>
import functools

import jax
import jax.numpy as jnp
from jax.experimental import pallas as pl
from jax.experimental.pallas import tpu as pltpu

FILTER_SIZES = (3, 4, 5)


def _round_up(x, m):
    return ((x + m - 1) // m) * m


def _tpu_defaults():
    """(default b_tile, vmem_limit_bytes) per TPU generation."""
    try:
        kind = jax.devices()[0].device_kind.lower()
    except Exception:  # pragma: no cover - defensive
        kind = ''
    if 'v7' in kind:                       # 64 MiB physical VMEM per TC
        return 8, 56 * 1024 * 1024
    if 'v5' in kind or 'v6' in kind:       # 128 MiB physical VMEM
        return 16, 96 * 1024 * 1024
    return 8, 48 * 1024 * 1024             # unknown: stay conservative


def textcnn_kernel(*refs, seq_len, filter_sizes, fp, time_chunk):
    """refs = (emb, w_bank0..w_bankN, bcat, wfc, bfc, out)."""
    n_banks = len(filter_sizes)
    emb_ref = refs[0]
    w_refs = refs[1:1 + n_banks]
    bcat_ref, wfc_ref, bfc_ref, out_ref = refs[1 + n_banks:]

    emb = emb_ref[...]                                      # (BT, LP, EP) bf16

    pooled = []
    for bank, fs in enumerate(filter_sizes):
        # Per-bank lane-dense bf16 MXU matmul, f32 accumulation.
        # y[b, l, j*FP + f] = <emb[b, l, :], W_bank[f, j, :]>
        y = jnp.einsum('ble,ec->blc', emb, w_refs[bank][...],
                       preferred_element_type=jnp.float32)  # (BT, LP, fs*FP)

        nt = seq_len - fs + 1                               # valid conv length
        run_max = None
        # Time-chunked shift-add + running max over the valid range only
        # (all slice bounds are Python constants -> static, exact, no masks).
        for c in range(0, nt, time_chunk):
            cl = min(time_chunk, nt - c)
            acc = y[:, c:c + cl, 0:fp]
            for j in range(1, fs):
                acc = acc + y[:, c + j:c + j + cl, j * fp:(j + 1) * fp]
            cmax = jnp.max(acc, axis=1)                     # (BT, FP)
            run_max = cmax if run_max is None else jnp.maximum(run_max, cmax)

        # max_t relu(x_t + b) == relu((max_t x_t) + b)
        pooled.append(jnp.maximum(run_max + bcat_ref[bank:bank + 1, :], 0.0))

    feat = jnp.concatenate(pooled, axis=1).astype(jnp.bfloat16)  # (BT, 3*FP)
    # TODO(synk): nn.Dropout(0.5) is identity in eval mode; training-mode
    # dropout would need pltpu.prng_seed / pltpu.prng_random_bits here.
    logits = jnp.dot(feat, wfc_ref[...],
                     preferred_element_type=jnp.float32) + bfc_ref[...]
    out_ref[...] = logits.astype(out_ref.dtype)


def pack_params(params, *, num_filters, embed_dim, num_classes):
    """Repack PyTorch-layout params into lane-dense kernel layouts."""
    F, E, C = num_filters, embed_dim, num_classes
    FP = _round_up(F, 128)          # pad filters to a 128-lane slot
    CP = _round_up(C, 128)          # pad classes to 128 lanes
    EP = _round_up(E, 128)          # pad contraction dim to 128 lanes
    n_banks = len(FILTER_SIZES)
    # Note: with tiny F (e.g. 16) most of the FP=128 lane slot is zero padding
    # (wasted MXU columns); for production F~100-128 the waste is <=28%.

    packed = {}
    for fs in FILTER_SIZES:
        w = params[f'w{fs}']                      # (F, fs, E) == Conv2d (F,1,fs,E)
        wb = jnp.zeros((EP, fs, FP), jnp.float32)
        for j in range(fs):
            wb = wb.at[:E, j, :F].set(w[:, j, :].T)
        packed[f'wconv{fs}'] = wb.reshape(EP, fs * FP).astype(jnp.bfloat16)

    bcat = jnp.zeros((n_banks, FP), jnp.float32)
    for bank, fs in enumerate(FILTER_SIZES):
        bcat = bcat.at[bank, :F].set(params[f'b{fs}'])

    wfc = jnp.zeros((n_banks * FP, CP), jnp.float32)
    for bank in range(n_banks):
        wfc = wfc.at[bank * FP:bank * FP + F, :C].set(
            params['fc_w'][bank * F:(bank + 1) * F, :])
    bfc = jnp.zeros((1, CP), jnp.float32).at[0, :C].set(params['fc_b'])

    packed.update({
        'embedding': params['embedding'].astype(jnp.bfloat16),
        'bcat': bcat, 'wfc': wfc.astype(jnp.bfloat16), 'bfc': bfc,
        'F': F, 'E': E, 'C': C, 'FP': FP, 'CP': CP, 'EP': EP,
    })
    return packed


def textcnn_forward(token_ids, packed, *, b_tile=None, time_chunk=64):
    E, C = packed['E'], packed['C']
    EP, FP, CP = packed['EP'], packed['FP'], packed['CP']
    B, L = token_ids.shape
    assert L >= max(FILTER_SIZES), "sequence shorter than largest filter"

    default_tile, vmem_limit = _tpu_defaults()
    if b_tile is None:
        b_tile = default_tile
    # Keep at least 2 grid steps when the batch allows it (v7x has 2 TCs);
    # b_tile stays a multiple of 8 so the output block is sublane-aligned.
    b_tile = max(8, min(b_tile, _round_up(-(-B // 2), 8)))

    # TODO(synk): the embedding gather could be fused into the kernel via
    # PrefetchScalarGridSpec + chunked DMA gather from an HBM-resident bf16
    # table to remove one HBM round trip of the (B, L, E) activation (largest
    # relative win on v5e); kept in XLA here.
    emb = jnp.take(packed['embedding'], token_ids, axis=0)       # (B, L, E) bf16

    LP = _round_up(L, 8)                 # sublane-aligned time extent
    Bp = _round_up(B, b_tile)
    emb = jnp.pad(emb, ((0, Bp - B), (0, LP - L), (0, EP - E)))  # zero pad

    n_banks = len(FILTER_SIZES)

    kernel = functools.partial(textcnn_kernel, seq_len=L,
                               filter_sizes=FILTER_SIZES, fp=FP,
                               time_chunk=time_chunk)

    conv_flops = sum(2 * Bp * LP * EP * (fs * FP) for fs in FILTER_SIZES)
    fc_flops = 2 * Bp * (n_banks * FP) * CP
    bytes_accessed = (emb.size * 2
                      + sum(packed[f'wconv{fs}'].size * 2 for fs in FILTER_SIZES)
                      + packed['bcat'].size * 4 + packed['wfc'].size * 2
                      + packed['bfc'].size * 4 + Bp * CP * 4)

    conv_w = [packed[f'wconv{fs}'] for fs in FILTER_SIZES]
    conv_w_specs = [pl.BlockSpec((EP, fs * FP), lambda b: (0, 0))
                    for fs in FILTER_SIZES]

    out = pl.pallas_call(
        kernel,
        out_shape=jax.ShapeDtypeStruct((Bp, CP), jnp.float32),
        grid=(Bp // b_tile,),
        in_specs=[
            pl.BlockSpec((b_tile, LP, EP), lambda b: (b, 0, 0)),  # activation
            *conv_w_specs,                                        # per-bank conv W
            pl.BlockSpec((n_banks, FP), lambda b: (0, 0)),        # conv biases
            pl.BlockSpec((n_banks * FP, CP), lambda b: (0, 0)),   # fc W (bf16)
            pl.BlockSpec((1, CP), lambda b: (0, 0)),              # fc b
        ],
        out_specs=pl.BlockSpec((b_tile, CP), lambda b: (b, 0)),
        compiler_params=pltpu.CompilerParams(
            dimension_semantics=("parallel",),
            vmem_limit_bytes=int(vmem_limit)),
        cost_estimate=pl.CostEstimate(flops=int(conv_flops + fc_flops),
                                      transcendentals=0,
                                      bytes_accessed=int(bytes_accessed)),
    )(emb, *conv_w, packed['bcat'], packed['wfc'], packed['bfc'])

    return out[:B, :C]


def make_params(key, vocab_size, embed_dim, num_classes, num_filters):
    """Parameters in natural PyTorch layout (Conv2d weight squeezed to (F,fs,E))."""
    ks = jax.random.split(key, 2 * len(FILTER_SIZES) + 3)
    params = {}
    params['embedding'] = jax.random.normal(ks[0], (vocab_size, embed_dim),
                                            dtype=jnp.float32)
    for i, fs in enumerate(FILTER_SIZES):
        bound = 1.0 / float(fs * embed_dim) ** 0.5
        params[f'w{fs}'] = jax.random.uniform(
            ks[1 + 2 * i], (num_filters, fs, embed_dim),
            minval=-bound, maxval=bound, dtype=jnp.float32)
        params[f'b{fs}'] = jax.random.uniform(
            ks[2 + 2 * i], (num_filters,),
            minval=-bound, maxval=bound, dtype=jnp.float32)
    fan_in = num_filters * len(FILTER_SIZES)
    bound = 1.0 / float(fan_in) ** 0.5
    params['fc_w'] = jax.random.uniform(ks[-2], (fan_in, num_classes),
                                        minval=-bound, maxval=bound,
                                        dtype=jnp.float32)
    params['fc_b'] = jax.random.uniform(ks[-1], (num_classes,),
                                        minval=-bound, maxval=bound,
                                        dtype=jnp.float32)
    return params


def textcnn_reference(token_ids, params, quantize_bf16=False):
    """Pure-JAX reference of the PyTorch forward (eval mode)."""
    def q(x):
        return x.astype(jnp.bfloat16).astype(jnp.float32) if quantize_bf16 else x
    emb = q(params['embedding'])[token_ids]                       # (B, L, E)
    B, L, E = emb.shape
    pooled = []
    for fs in FILTER_SIZES:
        W = q(params[f'w{fs}'])                                   # (F, fs, E)
        nt = L - fs + 1
        windows = jnp.stack([emb[:, j:j + nt, :] for j in range(fs)], axis=2)
        conv = jnp.einsum('btje,fje->btf', windows, W) + params[f'b{fs}']
        pooled.append(jnp.max(jax.nn.relu(conv), axis=1))
    feat = jnp.concatenate(pooled, axis=1)
    return q(feat) @ q(params['fc_w']) + params['fc_b']


if __name__ == "__main__":
    # Small shapes consistent with the module's forward:
    vocab_size, embed_dim, num_classes, num_filters = 50, 32, 2, 16
    batch, seq_len = 2, 16

    key = jax.random.PRNGKey(0)
    k_tok, k_par = jax.random.split(key)
    token_ids = jax.random.randint(k_tok, (batch, seq_len), 0, vocab_size,
                                   dtype=jnp.int32)
    params = make_params(k_par, vocab_size, embed_dim, num_classes, num_filters)
    packed = pack_params(params, num_filters=num_filters, embed_dim=embed_dim,
                         num_classes=num_classes)

    logits = textcnn_forward(token_ids, packed)
    logits = jax.block_until_ready(logits)

    # Compare against an f32 reference fed the same bf16-quantized inputs
    # (bf16 x bf16 products are exact in f32, so this is a tight check).
    ref = textcnn_reference(token_ids, params, quantize_bf16=True)
    assert logits.shape == (batch, num_classes)
    assert jnp.allclose(logits, ref, atol=1e-2, rtol=1e-2), (logits, ref)

    print("KERNEL_OK")
</pallas_src>

<mosaic_0001>
module attributes {stable_mosaic.version = 11 : i64} {
  func.func @textcnn_kernel(%arg0: i32, %arg1: memref<8x16x128xbf16, #tpu.memory_space<vmem>>, %arg2: memref<128x384xbf16, #tpu.memory_space<vmem>>, %arg3: memref<128x512xbf16, #tpu.memory_space<vmem>>, %arg4: memref<128x640xbf16, #tpu.memory_space<vmem>>, %arg5: memref<3x128xf32, #tpu.memory_space<vmem>>, %arg6: memref<384x128xbf16, #tpu.memory_space<vmem>>, %arg7: memref<1x128xf32, #tpu.memory_space<vmem>>, %arg8: memref<8x128xf32, #tpu.memory_space<vmem>>) attributes {dimension_semantics = [#tpu.dimension_semantics<parallel>], iteration_bounds = array<i64: 1>, scalar_prefetch = 0 : i64, scratch_operands = 0 : i64, tpu.core_type = #tpu.core_type<tc>, window_params = [{transform_indices = @transform_0, window_bounds = array<i64: 8, 16, 128>}, {pipeline_mode = #tpu.pipeline_mode<synchronous>, transform_indices = @transform_1, window_bounds = array<i64: 128, 384>}, {pipeline_mode = #tpu.pipeline_mode<synchronous>, transform_indices = @transform_2, window_bounds = array<i64: 128, 512>}, {pipeline_mode = #tpu.pipeline_mode<synchronous>, transform_indices = @transform_3, window_bounds = array<i64: 128, 640>}, {pipeline_mode = #tpu.pipeline_mode<synchronous>, transform_indices = @transform_4, window_bounds = array<i64: 3, 128>}, {pipeline_mode = #tpu.pipeline_mode<synchronous>, transform_indices = @transform_5, window_bounds = array<i64: 384, 128>}, {pipeline_mode = #tpu.pipeline_mode<synchronous>, transform_indices = @transform_6, window_bounds = array<i64: 1, 128>}, {transform_indices = @transform_7, window_bounds = array<i64: 8, 128>}]} {
    %c0 = arith.constant 0 : index
    %c0_0 = arith.constant 0 : index
    %c0_1 = arith.constant 0 : index
    %0 = vector.load %arg1[%c0, %c0_0, %c0_1] : memref<8x16x128xbf16, #tpu.memory_space<vmem>>, vector<8x16x128xbf16>
    %c0_2 = arith.constant 0 : index
    %c0_3 = arith.constant 0 : index
    %1 = vector.load %arg2[%c0_2, %c0_3] : memref<128x384xbf16, #tpu.memory_space<vmem>>, vector<128x384xbf16>
    "tpu.trace_start"() <{level = 10 : i32, message = "ble,ec->blc"}> : () -> ()
    %cst = arith.constant dense<0.000000e+00> : vector<8x16x384xf32>
    %2 = tpu.matmul %0, %1, %cst {dimension_numbers = #tpu.dot_dimension_numbers<[2], [0], [0, 1], [1], [0, 0, 0, 1, 1, 1], [], []>} : vector<8x16x128xbf16>, vector<128x384xbf16>, vector<8x16x384xf32> -> vector<8x16x384xf32>
    "tpu.trace_stop"() : () -> ()
    %3 = vector.extract_strided_slice %2 {offsets = [0, 0, 0], sizes = [8, 14, 128], strides = [1, 1, 1]} : vector<8x16x384xf32> to vector<8x14x128xf32>
    %4 = vector.extract_strided_slice %2 {offsets = [0, 1, 128], sizes = [8, 14, 128], strides = [1, 1, 1]} : vector<8x16x384xf32> to vector<8x14x128xf32>
    %5 = arith.addf %3, %4 : vector<8x14x128xf32>
    %6 = vector.extract_strided_slice %2 {offsets = [0, 2, 256], sizes = [8, 14, 128], strides = [1, 1, 1]} : vector<8x16x384xf32> to vector<8x14x128xf32>
    %7 = arith.addf %5, %6 : vector<8x14x128xf32>
    %cst_4 = arith.constant dense<0xFF800000> : vector<8x128xf32>
    %8 = vector.multi_reduction <maximumf>, %7, %cst_4 [1] : vector<8x14x128xf32> to vector<8x128xf32>
    %c0_5 = arith.constant 0 : index
    %c0_6 = arith.constant 0 : index
    %9 = vector.load %arg5[%c0_5, %c0_6] : memref<3x128xf32, #tpu.memory_space<vmem>>, vector<1x128xf32>
    %10 = vector.broadcast %9 : vector<1x128xf32> to vector<8x128xf32>
    %11 = arith.addf %8, %10 : vector<8x128xf32>
    %cst_7 = arith.constant 0.000000e+00 : f32
    %12 = vector.broadcast %cst_7 : f32 to vector<8x128xf32>
    %13 = arith.maximumf %11, %12 : vector<8x128xf32>
    %c0_8 = arith.constant 0 : index
    %c0_9 = arith.constant 0 : index
    %14 = vector.load %arg3[%c0_8, %c0_9] : memref<128x512xbf16, #tpu.memory_space<vmem>>, vector<128x512xbf16>
    "tpu.trace_start"() <{level = 10 : i32, message = "ble,ec->blc"}> : () -> ()
    %cst_10 = arith.constant dense<0.000000e+00> : vector<8x16x512xf32>
    %15 = tpu.matmul %0, %14, %cst_10 {dimension_numbers = #tpu.dot_dimension_numbers<[2], [0], [0, 1], [1], [0, 0, 0, 1, 1, 1], [], []>} : vector<8x16x128xbf16>, vector<128x512xbf16>, vector<8x16x512xf32> -> vector<8x16x512xf32>
    "tpu.trace_stop"() : () -> ()
    %16 = vector.extract_strided_slice %15 {offsets = [0, 0, 0], sizes = [8, 13, 128], strides = [1, 1, 1]} : vector<8x16x512xf32> to vector<8x13x128xf32>
    %17 = vector.extract_strided_slice %15 {offsets = [0, 1, 128], sizes = [8, 13, 128], strides = [1, 1, 1]} : vector<8x16x512xf32> to vector<8x13x128xf32>
    %18 = arith.addf %16, %17 : vector<8x13x128xf32>
    %19 = vector.extract_strided_slice %15 {offsets = [0, 2, 256], sizes = [8, 13, 128], strides = [1, 1, 1]} : vector<8x16x512xf32> to vector<8x13x128xf32>
    %20 = arith.addf %18, %19 : vector<8x13x128xf32>
    %21 = vector.extract_strided_slice %15 {offsets = [0, 3, 384], sizes = [8, 13, 128], strides = [1, 1, 1]} : vector<8x16x512xf32> to vector<8x13x128xf32>
    %22 = arith.addf %20, %21 : vector<8x13x128xf32>
    %cst_11 = arith.constant dense<0xFF800000> : vector<8x128xf32>
    %23 = vector.multi_reduction <maximumf>, %22, %cst_11 [1] : vector<8x13x128xf32> to vector<8x128xf32>
    %c1 = arith.constant 1 : index
    %c0_12 = arith.constant 0 : index
    %24 = vector.load %arg5[%c1, %c0_12] : memref<3x128xf32, #tpu.memory_space<vmem>>, vector<1x128xf32>
    %25 = vector.broadcast %24 : vector<1x128xf32> to vector<8x128xf32>
    %26 = arith.addf %23, %25 : vector<8x128xf32>
    %cst_13 = arith.constant 0.000000e+00 : f32
    %27 = vector.broadcast %cst_13 : f32 to vector<8x128xf32>
    %28 = arith.maximumf %26, %27 : vector<8x128xf32>
    %c0_14 = arith.constant 0 : index
    %c0_15 = arith.constant 0 : index
    %29 = vector.load %arg4[%c0_14, %c0_15] : memref<128x640xbf16, #tpu.memory_space<vmem>>, vector<128x640xbf16>
    "tpu.trace_start"() <{level = 10 : i32, message = "ble,ec->blc"}> : () -> ()
    %cst_16 = arith.constant dense<0.000000e+00> : vector<8x16x640xf32>
    %30 = tpu.matmul %0, %29, %cst_16 {dimension_numbers = #tpu.dot_dimension_numbers<[2], [0], [0, 1], [1], [0, 0, 0, 1, 1, 1], [], []>} : vector<8x16x128xbf16>, vector<128x640xbf16>, vector<8x16x640xf32> -> vector<8x16x640xf32>
    "tpu.trace_stop"() : () -> ()
    %31 = vector.extract_strided_slice %30 {offsets = [0, 0, 0], sizes = [8, 12, 128], strides = [1, 1, 1]} : vector<8x16x640xf32> to vector<8x12x128xf32>
    %32 = vector.extract_strided_slice %30 {offsets = [0, 1, 128], sizes = [8, 12, 128], strides = [1, 1, 1]} : vector<8x16x640xf32> to vector<8x12x128xf32>
    %33 = arith.addf %31, %32 : vector<8x12x128xf32>
    %34 = vector.extract_strided_slice %30 {offsets = [0, 2, 256], sizes = [8, 12, 128], strides = [1, 1, 1]} : vector<8x16x640xf32> to vector<8x12x128xf32>
    %35 = arith.addf %33, %34 : vector<8x12x128xf32>
    %36 = vector.extract_strided_slice %30 {offsets = [0, 3, 384], sizes = [8, 12, 128], strides = [1, 1, 1]} : vector<8x16x640xf32> to vector<8x12x128xf32>
    %37 = arith.addf %35, %36 : vector<8x12x128xf32>
    %38 = vector.extract_strided_slice %30 {offsets = [0, 4, 512], sizes = [8, 12, 128], strides = [1, 1, 1]} : vector<8x16x640xf32> to vector<8x12x128xf32>
    %39 = arith.addf %37, %38 : vector<8x12x128xf32>
    %cst_17 = arith.constant dense<0xFF800000> : vector<8x128xf32>
    %40 = vector.multi_reduction <maximumf>, %39, %cst_17 [1] : vector<8x12x128xf32> to vector<8x128xf32>
    %c2 = arith.constant 2 : index
    %c0_18 = arith.constant 0 : index
    %41 = vector.load %arg5[%c2, %c0_18] : memref<3x128xf32, #tpu.memory_space<vmem>>, vector<1x128xf32>
    %42 = vector.broadcast %41 : vector<1x128xf32> to vector<8x128xf32>
    %43 = arith.addf %40, %42 : vector<8x128xf32>
    %cst_19 = arith.constant 0.000000e+00 : f32
    %44 = vector.broadcast %cst_19 : f32 to vector<8x128xf32>
    %45 = arith.maximumf %43, %44 : vector<8x128xf32>
    %46 = tpu.concatenate %13, %28, %45 in 1 : vector<8x128xf32>, vector<8x128xf32>, vector<8x128xf32> -> vector<8x384xf32>
    %47 = arith.truncf %46 : vector<8x384xf32> to vector<8x384xbf16>
    %c0_20 = arith.constant 0 : index
    %c0_21 = arith.constant 0 : index
    %48 = vector.load %arg6[%c0_20, %c0_21] : memref<384x128xbf16, #tpu.memory_space<vmem>>, vector<384x128xbf16>
    %cst_22 = arith.constant dense<0.000000e+00> : vector<8x128xf32>
    %49 = tpu.matmul %47, %48, %cst_22 {dimension_numbers = #tpu.dot_dimension_numbers<[1], [0], [0], [1], [0, 0, 1, 1], [], []>} : vector<8x384xbf16>, vector<384x128xbf16>, vector<8x128xf32> -> vector<8x128xf32>
    %c0_23 = arith.constant 0 : index
    %c0_24 = arith.constant 0 : index
    %50 = vector.load %arg7[%c0_23, %c0_24] : memref<1x128xf32, #tpu.memory_space<vmem>>, vector<1x128xf32>
    %51 = vector.broadcast %50 : vector<1x128xf32> to vector<8x128xf32>
    %52 = arith.addf %49, %51 : vector<8x128xf32>
    %c0_25 = arith.constant 0 : index
    %c0_26 = arith.constant 0 : index
    %53 = vector.load %arg8[%c0_25, %c0_26] : memref<8x128xf32, #tpu.memory_space<vmem>>, vector<8x128xf32>
    tpu.vector_store %arg8[%c0_25, %c0_26], %52 {strides = array<i32>} : memref<8x128xf32, #tpu.memory_space<vmem>>, vector<8x128xf32>,
    return
  }
  func.func @transform_0(%arg0: i32) -> (i32, i32, i32) {
    %c0_i32 = arith.constant 0 : i32
    %c0_i32_0 = arith.constant 0 : i32
    %c0_i32_1 = arith.constant 0 : i32
    return %arg0, %c0_i32, %c0_i32_0 : i32, i32, i32
  }
  func.func @transform_1(%arg0: i32) -> (i32, i32) {
    %c0_i32 = arith.constant 0 : i32
    %c0_i32_0 = arith.constant 0 : i32
    %c0_i32_1 = arith.constant 0 : i32
    return %c0_i32, %c0_i32_0 : i32, i32
  }
  func.func @transform_2(%arg0: i32) -> (i32, i32) {
    %c0_i32 = arith.constant 0 : i32
    %c0_i32_0 = arith.constant 0 : i32
    %c0_i32_1 = arith.constant 0 : i32
    return %c0_i32, %c0_i32_0 : i32, i32
  }
  func.func @transform_3(%arg0: i32) -> (i32, i32) {
    %c0_i32 = arith.constant 0 : i32
    %c0_i32_0 = arith.constant 0 : i32
    %c0_i32_1 = arith.constant 0 : i32
    return %c0_i32, %c0_i32_0 : i32, i32
  }
  func.func @transform_4(%arg0: i32) -> (i32, i32) {
    %c0_i32 = arith.constant 0 : i32
    %c0_i32_0 = arith.constant 0 : i32
    %c0_i32_1 = arith.constant 0 : i32
    return %c0_i32, %c0_i32_0 : i32, i32
  }
  func.func @transform_5(%arg0: i32) -> (i32, i32) {
    %c0_i32 = arith.constant 0 : i32
    %c0_i32_0 = arith.constant 0 : i32
    %c0_i32_1 = arith.constant 0 : i32
    return %c0_i32, %c0_i32_0 : i32, i32
  }
  func.func @transform_6(%arg0: i32) -> (i32, i32) {
    %c0_i32 = arith.constant 0 : i32
    %c0_i32_0 = arith.constant 0 : i32
    %c0_i32_1 = arith.constant 0 : i32
    return %c0_i32, %c0_i32_0 : i32, i32
  }
  func.func @transform_7(%arg0: i32) -> (i32, i32) {
    %c0_i32 = arith.constant 0 : i32
    %c0_i32_0 = arith.constant 0 : i32
    return %arg0, %c0_i32 : i32, i32
  }
}

</mosaic_0001>

<llo_original>
// kernel: tpu_custom_call.1
$region0: #{tpu_custom_call.1}
  #allocation0 [shape = 'u32[]', space=smem, size = 0x4, offset = 0x4, fixed_abs, tag = 'smem constant byte address 0x4 - core index']
  #allocation1 [shape = 'u32[72,128]{1,0:T(1,128)}', space=vmem, size = 0x9000, scoped, tag = 'internal scratch']
  %s0 = inlined_call_operand.hbm [shape: bf16[8,16,128], index: 0, kind: input, shape index: {}]
  %s1 = inlined_call_operand.hbm [shape: bf16[128,384], index: 1, kind: input, shape index: {}]
  %s2 = inlined_call_operand.hbm [shape: bf16[128,512], index: 2, kind: input, shape index: {}]
  %s3 = inlined_call_operand.hbm [shape: bf16[128,640], index: 3, kind: input, shape index: {}]
  %s4 = inlined_call_operand.hbm [shape: f32[3,128], index: 4, kind: input, shape index: {}]
  %s5 = inlined_call_operand.hbm [shape: bf16[384,128], index: 5, kind: input, shape index: {}]
  %s6 = inlined_call_operand.vmem [shape: f32[1,128], index: 6, kind: input, shape index: {}]
  %s7 = inlined_call_operand.hbm [shape: f32[8,128], index: 7, kind: output, shape index: {}]
  %s8 = sld [smem:[#allocation0]]
  $region62: #{tpu_custom_call.1} parent=0
    _
  %s10 = ssub.s32 1, %s8
  %s11 = scalar_select 0, %s10, %s8
  $region1: #{tpu_custom_call.1} parent=0
    #allocation2 [shape = 'u8[32768]{0}', space=vmem, size = 0x8000, scoped, tag = 'input window, operand 0, single buffered']
    #allocation3 [shape = 's32[1]{0}', space=sflag, size = 0x4, scoped, tag = 'scoped memory for tpu_custom_call.1']
    #allocation4 [shape = 's32[1]{0}', space=sflag, size = 0x4, scoped, tag = 'scoped memory for tpu_custom_call.1']
    #allocation5 [shape = 'u8[98304]{0}', space=vmem, size = 0x18000, scoped, tag = 'input window, operand 1, single buffered']
    #allocation6 [shape = 's32[1]{0}', space=sflag, size = 0x4, scoped, tag = 'scoped memory for tpu_custom_call.1']
    #allocation7 [shape = 'u8[131072]{0}', space=vmem, size = 0x20000, scoped, tag = 'input window, operand 2, single buffered']
    #allocation8 [shape = 'u8[163840]{0}', space=vmem, size = 0x28000, scoped, tag = 'input window, operand 3, single buffered']
    #allocation9 [shape = 's32[1]{0}', space=sflag, size = 0x4, scoped, tag = 'scoped memory for tpu_custom_call.1']
    #allocation10 [shape = 'u8[2048]{0}', space=vmem, size = 0x800, scoped, tag = 'input window, operand 4, single buffered']
    #allocation11 [shape = 'u8[98304]{0}', space=vmem, size = 0x18000, scoped, tag = 'input window, operand 5, single buffered']
    #allocation12 [shape = 's32[1]{0}', space=sflag, size = 0x4, scoped, tag = 'scoped memory for tpu_custom_call.1']
    #allocation13 [shape = 'u8[4096]{0}', space=vmem, size = 0x1000, scoped, tag = 'output window, operand 0, single buffered']
    %12 = vsyncpa [#allocation3], 0
    %13 = vsyncpa [#allocation6], 0
    %14 = vsyncpa [#allocation9], 0
    %15 = vsyncpa [#allocation12], 0
    %16 = vsyncpa [#allocation4], 0
    // Predicated region
    $region2: #{tpu_custom_call.1} parent=1 // pred_check
      _
    $region3: #{tpu_custom_call.1} parent=1 // pred_check_branch
      %18 = sbr.rel (0) target = $region5
    $region4: #{tpu_custom_call.1} parent=1 // pred_region
      %20 = vsyncadd [#allocation3], 0
      %s21 = sshll.u32 %s0, 4
      %s22 = int_to_ptr.hbm [resolvable:$true] %s21
      %s23 = sshll.u32 [#allocation2], 4
      %s24 = int_to_ptr.vmem [resolvable:$true] %s23
      %29 = dma.hbm_to_vmem [thread:$0]  %s22, 1024, %s24, [#allocation3], 64, 64, 4
    $region5: #{tpu_custom_call.1} parent=1 // pred_fallthru
      _
    // Predicated region
    $region6: #{tpu_custom_call.1} parent=1 // pred_check
      _
    $region7: #{tpu_custom_call.1} parent=1 // pred_check_branch
      %31 = sbr.rel (0) target = $region9
    $region8: #{tpu_custom_call.1} parent=1 // pred_region
      %33 = vsyncadd [#allocation6], 0
      %s34 = sshll.u32 %s1, 4
      %s35 = int_to_ptr.hbm [resolvable:$true] %s34
      %s36 = sshll.u32 [#allocation5], 4
      %s37 = int_to_ptr.vmem [resolvable:$true] %s36
      %42 = dma.hbm_to_vmem [thread:$0]  %s35, 3072, %s37, [#allocation6], 192, 192, 12
    $region9: #{tpu_custom_call.1} parent=1 // pred_fallthru
      _
    // Predicated region
    $region10: #{tpu_custom_call.1} parent=1 // pred_check
      _
    $region11: #{tpu_custom_call.1} parent=1 // pred_check_branch
      %44 = sbr.rel (0) target = $region13
    $region12: #{tpu_custom_call.1} parent=1 // pred_region
      %46 = vsyncadd [#allocation6], 0
      %s47 = sshll.u32 %s2, 4
      %s48 = int_to_ptr.hbm [resolvable:$true] %s47
      %s49 = sshll.u32 [#allocation7], 4
      %s50 = int_to_ptr.vmem [resolvable:$true] %s49
      %55 = dma.hbm_to_vmem [thread:$0]  %s48, 4096, %s50, [#allocation6], 256, 256, 16
    $region13: #{tpu_custom_call.1} parent=1 // pred_fallthru
      _
    // Predicated region
    $region14: #{tpu_custom_call.1} parent=1 // pred_check
      _
    $region15: #{tpu_custom_call.1} parent=1 // pred_check_branch
      %57 = sbr.rel (0) target = $region17
    $region16: #{tpu_custom_call.1} parent=1 // pred_region
      %59 = vsyncadd [#allocation9], 0
      %s60 = sshll.u32 %s3, 4
      %s61 = int_to_ptr.hbm [resolvable:$true] %s60
      %s62 = sshll.u32 [#allocation8], 4
      %s63 = int_to_ptr.vmem [resolvable:$true] %s62
      %68 = dma.hbm_to_vmem [thread:$0]  %s61, 5120, %s63, [#allocation9], 320, 320, 20
    $region17: #{tpu_custom_call.1} parent=1 // pred_fallthru
      _
    // Predicated region
    $region18: #{tpu_custom_call.1} parent=1 // pred_check
      _
    $region19: #{tpu_custom_call.1} parent=1 // pred_check_branch
      %70 = sbr.rel (0) target = $region21
    $region20: #{tpu_custom_call.1} parent=1 // pred_region
      %72 = vsyncadd [#allocation9], 0
      %s74 = sshll.u32 %s4, 4
      %s75 = int_to_ptr.hbm [resolvable:$true] %s74
      %s76 = sshll.u32 [#allocation10], 4
      %s77 = int_to_ptr.vmem [resolvable:$true] %s76
      %79 = dma.hbm_to_vmem [thread:$0]  %s75, 64, %s77, [#allocation9]
    $region21: #{tpu_custom_call.1} parent=1 // pred_fallthru
      _
    // Predicated region
    $region22: #{tpu_custom_call.1} parent=1 // pred_check
      _
    $region23: #{tpu_custom_call.1} parent=1 // pred_check_branch
      %81 = sbr.rel (0) target = $region25
    $region24: #{tpu_custom_call.1} parent=1 // pred_region
      %83 = vsyncadd [#allocation12], 0
      %s84 = sshll.u32 %s5, 4
      %s85 = int_to_ptr.hbm [resolvable:$true] %s84
      %s86 = sshll.u32 [#allocation11], 4
      %s87 = int_to_ptr.vmem [resolvable:$true] %s86
      %92 = dma.hbm_to_vmem [thread:$0]  %s85, 3072, %s87, [#allocation12], 64, 64, 4
    $region25: #{tpu_custom_call.1} parent=1 // pred_fallthru
      _
    // Predicated region
    $region26: #{tpu_custom_call.1} parent=1 // pred_check
      _
    $region27: #{tpu_custom_call.1} parent=1 // pred_check_branch
      %94 = sbr.rel (0) target = $region29
    $region28: #{tpu_custom_call.1} parent=1 // pred_region
      _
    $region29: #{tpu_custom_call.1} parent=1 // pred_fallthru
      _
    // Predicated region
    $region30: #{tpu_custom_call.1} parent=1 // pred_check
      _
    $region31: #{tpu_custom_call.1} parent=1 // pred_check_branch
      %96 = sbr.rel (0) target = $region33
    $region32: #{tpu_custom_call.1} parent=1 // pred_region
      %98 = dma.done [#allocation3], 1024
    $region33: #{tpu_custom_call.1} parent=1 // pred_fallthru
      _
    // Predicated region
    $region34: #{tpu_custom_call.1} parent=1 // pred_check
      _
    $region35: #{tpu_custom_call.1} parent=1 // pred_check_branch
      %100 = sbr.rel (0) target = $region37
    $region36: #{tpu_custom_call.1} parent=1 // pred_region
      %102 = dma.done [#allocation6], 3072
    $region37: #{tpu_custom_call.1} parent=1 // pred_fallthru
      _
    // Predicated region
    $region38: #{tpu_custom_call.1} parent=1 // pred_check
      _
    $region39: #{tpu_custom_call.1} parent=1 // pred_check_branch
      %104 = sbr.rel (0) target = $region41
    $region40: #{tpu_custom_call.1} parent=1 // pred_region
      %106 = dma.done [#allocation6], 4096
    $region41: #{tpu_custom_call.1} parent=1 // pred_fallthru
      _
    // Predicated region
    $region42: #{tpu_custom_call.1} parent=1 // pred_check
      _
    $region43: #{tpu_custom_call.1} parent=1 // pred_check_branch
      %108 = sbr.rel (0) target = $region45
    $region44: #{tpu_custom_call.1} parent=1 // pred_region
      %110 = dma.done [#allocation9], 5120
    $region45: #{tpu_custom_call.1} parent=1 // pred_fallthru
      _
    // Predicated region
    $region46: #{tpu_custom_call.1} parent=1 // pred_check
      _
    $region47: #{tpu_custom_call.1} parent=1 // pred_check_branch
      %112 = sbr.rel (0) target = $region49
    $region48: #{tpu_custom_call.1} parent=1 // pred_region
      %114 = dma.done [#allocation9], 64
    $region49: #{tpu_custom_call.1} parent=1 // pred_fallthru
      _
    // Predicated region
    $region50: #{tpu_custom_call.1} parent=1 // pred_check
      _
    $region51: #{tpu_custom_call.1} parent=1 // pred_check_branch
      %116 = sbr.rel (0) target = $region53
    $region52: #{tpu_custom_call.1} parent=1 // pred_region
      %118 = dma.done [#allocation12], 3072
    $region53: #{tpu_custom_call.1} parent=1 // pred_fallthru
      _
    %v119 = vld [vmem:[#allocation2] sm:$0xf]
    %v120 = vld [vmem:[#allocation2 + $0x4] sm:$0xf]
    %v121 = vld [vmem:[#allocation2 + $0x8] sm:$0xf]
    %v122 = vld [vmem:[#allocation2 + $0xc] sm:$0xf]
    %v123 = vld [vmem:[#allocation2 + $0x10] sm:$0xf]
    %v124 = vld [vmem:[#allocation2 + $0x14] sm:$0xf]
    %v125 = vld [vmem:[#allocation2 + $0x18] sm:$0xf]
    %v126 = vld [vmem:[#allocation2 + $0x1c] sm:$0xf]
    %v127 = vld [vmem:[#allocation2 + $0x20] sm:$0xf]
    %v128 = vld [vmem:[#allocation2 + $0x24] sm:$0xf]
    %v129 = vld [vmem:[#allocation2 + $0x28] sm:$0xf]
    %v130 = vld [vmem:[#allocation2 + $0x2c] sm:$0xf]
    %v131 = vld [vmem:[#allocation2 + $0x30] sm:$0xf]
    %v132 = vld [vmem:[#allocation2 + $0x34] sm:$0xf]
    %v133 = vld [vmem:[#allocation2 + $0x38] sm:$0xf]
    %v134 = vld [vmem:[#allocation2 + $0x3c] sm:$0xf]
    %v135 = vld [vmem:[#allocation5] sm:$0xff]
    %v136 = vld [vmem:[#allocation5 + $0x8] sm:$0xf]
    %v137 = vld [vmem:[#allocation5 + $0xc] sm:$0xff]
    %v138 = vld [vmem:[#allocation5 + $0x14] sm:$0xf]
    %v139 = vld [vmem:[#allocation5 + $0x18] sm:$0xff]
    %v140 = vld [vmem:[#allocation5 + $0x20] sm:$0xf]
    %v141 = vld [vmem:[#allocation5 + $0x24] sm:$0xff]
    %v142 = vld [vmem:[#allocation5 + $0x2c] sm:$0xf]
    %v143 = vld [vmem:[#allocation5 + $0x30] sm:$0xff]
    %v144 = vld [vmem:[#allocation5 + $0x38] sm:$0xf]
    %v145 = vld [vmem:[#allocation5 + $0x3c] sm:$0xff]
    %v146 = vld [vmem:[#allocation5 + $0x44] sm:$0xf]
    %v147 = vld [vmem:[#allocation5 + $0x48] sm:$0xff]
    %v148 = vld [vmem:[#allocation5 + $0x50] sm:$0xf]
    %v149 = vld [vmem:[#allocation5 + $0x54] sm:$0xff]
    %v150 = vld [vmem:[#allocation5 + $0x5c] sm:$0xf]
    %v151 = vld [vmem:[#allocation5 + $0x60] sm:$0xff]
    %v152 = vld [vmem:[#allocation5 + $0x68] sm:$0xf]
    %v153 = vld [vmem:[#allocation5 + $0x6c] sm:$0xff]
    %v154 = vld [vmem:[#allocation5 + $0x74] sm:$0xf]
    %v155 = vld [vmem:[#allocation5 + $0x78] sm:$0xff]
    %v156 = vld [vmem:[#allocation5 + $0x80] sm:$0xf]
    %v157 = vld [vmem:[#allocation5 + $0x84] sm:$0xff]
    %v158 = vld [vmem:[#allocation5 + $0x8c] sm:$0xf]
    %v159 = vld [vmem:[#allocation5 + $0x90] sm:$0xff]
    %v160 = vld [vmem:[#allocation5 + $0x98] sm:$0xf]
    %v161 = vld [vmem:[#allocation5 + $0x9c] sm:$0xff]
    %v162 = vld [vmem:[#allocation5 + $0xa4] sm:$0xf]
    %v163 = vld [vmem:[#allocation5 + $0xa8] sm:$0xff]
    %v164 = vld [vmem:[#allocation5 + $0xb0] sm:$0xf]
    %v165 = vld [vmem:[#allocation5 + $0xb4] sm:$0xff]
    %v166 = vld [vmem:[#allocation5 + $0xbc] sm:$0xf]
    %v183 = vunpack.c.l.b16 %v119
    %v184 = vunpack.c.l.b16 %v120
    %v185 = vunpack.c.l.b16 %v121
    %v186 = vunpack.c.l.b16 %v122
    %v187 = vunpack.c.l.b16 %v123
    %v188 = vunpack.c.l.b16 %v124
    %v189 = vunpack.c.l.b16 %v125
    %v190 = vunpack.c.l.b16 %v126
    %v191 = vunpack.c.l.b16 %v127
    %v192 = vunpack.c.l.b16 %v128
    %v193 = vunpack.c.l.b16 %v129
    %v194 = vunpack.c.l.b16 %v130
    %v195 = vunpack.c.l.b16 %v131
    %v196 = vunpack.c.l.b16 %v132
    %v197 = vunpack.c.l.b16 %v133
    %v198 = vunpack.c.l.b16 %v134
    %v199 = vpack.c.b16 %v184, %v183
    %v200 = vpack.c.b16 %v186, %v185
    %v201 = vpack.c.b16 %v188, %v187
    %v202 = vpack.c.b16 %v190, %v189
    %v203 = vpack.c.b16 %v192, %v191
    %v204 = vpack.c.b16 %v194, %v193
    %v205 = vpack.c.b16 %v196, %v195
    %v206 = vpack.c.b16 %v198, %v197
    %v247 = vunpack.c.l.b16 %v135
    %v248 = vunpack.c.h.b16 %v135
    %v249 = vunpack.c.l.b16 %v136
    %v250 = vunpack.c.l.b16 %v137
    %v251 = vunpack.c.h.b16 %v137
    %v252 = vunpack.c.l.b16 %v138
    %v253 = vunpack.c.l.b16 %v139
    %v254 = vunpack.c.h.b16 %v139
    %v255 = vunpack.c.l.b16 %v140
    %v256 = vunpack.c.l.b16 %v141
    %v257 = vunpack.c.h.b16 %v141
    %v258 = vunpack.c.l.b16 %v142
    %v259 = vunpack.c.l.b16 %v143
    %v260 = vunpack.c.h.b16 %v143
    %v261 = vunpack.c.l.b16 %v144
    %v262 = vunpack.c.l.b16 %v145
    %v263 = vunpack.c.h.b16 %v145
    %v264 = vunpack.c.l.b16 %v146
    %v265 = vunpack.c.l.b16 %v147
    %v266 = vunpack.c.h.b16 %v147
    %v267 = vunpack.c.l.b16 %v148
    %v268 = vunpack.c.l.b16 %v149
    %v269 = vunpack.c.h.b16 %v149
    %v270 = vunpack.c.l.b16 %v150
    %v271 = vunpack.c.l.b16 %v151
    %v272 = vunpack.c.h.b16 %v151
    %v273 = vunpack.c.l.b16 %v152
    %v274 = vunpack.c.l.b16 %v153
    %v275 = vunpack.c.h.b16 %v153
    %v276 = vunpack.c.l.b16 %v154
    %v277 = vunpack.c.l.b16 %v155
    %v278 = vunpack.c.h.b16 %v155
    %v279 = vunpack.c.l.b16 %v156
    %v280 = vunpack.c.l.b16 %v157
    %v281 = vunpack.c.h.b16 %v157
    %v282 = vunpack.c.l.b16 %v158
    %v283 = vunpack.c.l.b16 %v159
    %v284 = vunpack.c.h.b16 %v159
    %v285 = vunpack.c.l.b16 %v160
    %v286 = vunpack.c.l.b16 %v161
    %v287 = vunpack.c.h.b16 %v161
    %v288 = vunpack.c.l.b16 %v162
    %v289 = vunpack.c.l.b16 %v163
    %v290 = vunpack.c.h.b16 %v163
    %v291 = vunpack.c.l.b16 %v164
    %v292 = vunpack.c.l.b16 %v165
    %v293 = vunpack.c.h.b16 %v165
    %v294 = vunpack.c.l.b16 %v166
    %v295 = vpack.c.b16 %v250, %v247
    %v296 = vpack.c.b16 %v251, %v248
    %v297 = vpack.c.b16 %v252, %v249
    %v298 = vpack.c.b16 %v256, %v253
    %v299 = vpack.c.b16 %v257, %v254
    %v300 = vpack.c.b16 %v258, %v255
    %v301 = vpack.c.b16 %v262, %v259
    %v302 = vpack.c.b16 %v263, %v260
    %v303 = vpack.c.b16 %v264, %v261
    %v304 = vpack.c.b16 %v268, %v265
    %v305 = vpack.c.b16 %v269, %v266
    %v306 = vpack.c.b16 %v270, %v267
    %v307 = vpack.c.b16 %v274, %v271
    %v308 = vpack.c.b16 %v275, %v272
    %v309 = vpack.c.b16 %v276, %v273
    %v310 = vpack.c.b16 %v280, %v277
    %v311 = vpack.c.b16 %v281, %v278
    %v312 = vpack.c.b16 %v282, %v279
    %v313 = vpack.c.b16 %v286, %v283
    %v314 = vpack.c.b16 %v287, %v284
    %v315 = vpack.c.b16 %v288, %v285
    %v316 = vpack.c.b16 %v292, %v289
    %v317 = vpack.c.b16 %v293, %v290
    %v318 = vpack.c.b16 %v294, %v291
    %343 = vmatpush.bf16.msra.mxu0 %v316
    %344 = vmatpush.bf16.msra.mxu0 %v313
    %345 = vmatpush.bf16.msra.mxu0 %v310
    %346 = vmatpush.bf16.msra.mxu0 %v307
    %347 = vmatpush.bf16.msra.mxu0 %v304
    %348 = vmatpush.bf16.msra.mxu0 %v301
    %349 = vmatpush.bf16.msra.mxu0 %v298
    %350 = vmatpush.bf16.msra.mxu0 %v295
    %351 = vmatmul.bf16.gmra.mxu0 %v199
    %v352 = vpop.f32.mrf.mxu0
    %v353 = vadd.f32 0.0, %v352
    %v354 = vpop.f32.mrf.mxu0
    %v355 = vadd.f32 0.0, %v354
    %356 = vmatmul.bf16.gmra.mxu0 %v200
    %v357 = vpop.f32.mrf.mxu0
    %v358 = vadd.f32 0.0, %v357
    %v359 = vpop.f32.mrf.mxu0
    %v360 = vadd.f32 0.0, %v359
    %361 = vmatmul.bf16.gmra.mxu0 %v201
    %v362 = vpop.f32.mrf.mxu0
    %v363 = vadd.f32 0.0, %v362
    %v364 = vpop.f32.mrf.mxu0
    %v365 = vadd.f32 0.0, %v364
    %366 = vmatmul.bf16.gmra.mxu0 %v202
    %v367 = vpop.f32.mrf.mxu0
    %v368 = vadd.f32 0.0, %v367
    %v369 = vpop.f32.mrf.mxu0
    %v370 = vadd.f32 0.0, %v369
    %371 = vmatmul.bf16.gmra.mxu0 %v203
    %v372 = vpop.f32.mrf.mxu0
    %v373 = vadd.f32 0.0, %v372
    %v374 = vpop.f32.mrf.mxu0
    %v375 = vadd.f32 0.0, %v374
    %376 = vmatmul.bf16.gmra.mxu0 %v204
    %v377 = vpop.f32.mrf.mxu0
    %v378 = vadd.f32 0.0, %v377
    %v379 = vpop.f32.mrf.mxu0
    %v380 = vadd.f32 0.0, %v379
    %381 = vmatmul.bf16.gmra.mxu0 %v205
    %v382 = vpop.f32.mrf.mxu0
    %v383 = vadd.f32 0.0, %v382
    %v384 = vpop.f32.mrf.mxu0
    %v385 = vadd.f32 0.0, %v384
    %386 = vmatmul.bf16.gmra.mxu0 %v206
    %v387 = vpop.f32.mrf.mxu0
    %v388 = vadd.f32 0.0, %v387
    %v389 = vpop.f32.mrf.mxu0
    %v390 = vadd.f32 0.0, %v389
    %391 = vdwg.mxu0
    %392 = vmatpush.bf16.msra.mxu0 %v317
    %393 = vmatpush.bf16.msra.mxu0 %v314
    %394 = vmatpush.bf16.msra.mxu0 %v311
    %395 = vmatpush.bf16.msra.mxu0 %v308
    %396 = vmatpush.bf16.msra.mxu0 %v305
    %397 = vmatpush.bf16.msra.mxu0 %v302
    %398 = vmatpush.bf16.msra.mxu0 %v299
    %399 = vmatpush.bf16.msra.mxu0 %v296
    %400 = vmatmul.bf16.gmra.mxu0 %v199
    %v401 = vpop.f32.mrf.mxu0
    %v402 = vadd.f32 0.0, %v401
    %v403 = vpop.f32.mrf.mxu0
    %v404 = vadd.f32 0.0, %v403
    %405 = vmatmul.bf16.gmra.mxu0 %v200
    %v406 = vpop.f32.mrf.mxu0
    %v407 = vadd.f32 0.0, %v406
    %v408 = vpop.f32.mrf.mxu0
    %v409 = vadd.f32 0.0, %v408
    %410 = vmatmul.bf16.gmra.mxu0 %v201
    %v411 = vpop.f32.mrf.mxu0
    %v412 = vadd.f32 0.0, %v411
    %v413 = vpop.f32.mrf.mxu0
    %v414 = vadd.f32 0.0, %v413
    %415 = vmatmul.bf16.gmra.mxu0 %v202
    %v416 = vpop.f32.mrf.mxu0
    %v417 = vadd.f32 0.0, %v416
    %v418 = vpop.f32.mrf.mxu0
    %v419 = vadd.f32 0.0, %v418
    %420 = vmatmul.bf16.gmra.mxu0 %v203
    %v421 = vpop.f32.mrf.mxu0
    %v422 = vadd.f32 0.0, %v421
    %v423 = vpop.f32.mrf.mxu0
    %v424 = vadd.f32 0.0, %v423
    %425 = vmatmul.bf16.gmra.mxu0 %v204
    %v426 = vpop.f32.mrf.mxu0
    %v427 = vadd.f32 0.0, %v426
    %v428 = vpop.f32.mrf.mxu0
    %v429 = vadd.f32 0.0, %v428
    %430 = vmatmul.bf16.gmra.mxu0 %v205
    %v431 = vpop.f32.mrf.mxu0
    %v432 = vadd.f32 0.0, %v431
    %v433 = vpop.f32.mrf.mxu0
    %v434 = vadd.f32 0.0, %v433
    %435 = vmatmul.bf16.gmra.mxu0 %v206
    %v436 = vpop.f32.mrf.mxu0
    %v437 = vadd.f32 0.0, %v436
    %v438 = vpop.f32.mrf.mxu0
    %v439 = vadd.f32 0.0, %v438
    %440 = vdwg.mxu0
    %441 = vmatpush.bf16.msra.mxu0 %v318
    %442 = vmatpush.bf16.msra.mxu0 %v315
    %443 = vmatpush.bf16.msra.mxu0 %v312
    %444 = vmatpush.bf16.msra.mxu0 %v309
    %445 = vmatpush.bf16.msra.mxu0 %v306
    %446 = vmatpush.bf16.msra.mxu0 %v303
    %447 = vmatpush.bf16.msra.mxu0 %v300
    %448 = vmatpush.bf16.msra.mxu0 %v297
    %449 = vmatmul.bf16.gmra.mxu0 %v199
    %v450 = vpop.f32.mrf.mxu0
    %v451 = vadd.f32 0.0, %v450
    %v452 = vpop.f32.mrf.mxu0
    %v453 = vadd.f32 0.0, %v452
    %454 = vmatmul.bf16.gmra.mxu0 %v200
    %v455 = vpop.f32.mrf.mxu0
    %v456 = vadd.f32 0.0, %v455
    %v457 = vpop.f32.mrf.mxu0
    %v458 = vadd.f32 0.0, %v457
    %459 = vmatmul.bf16.gmra.mxu0 %v201
    %v460 = vpop.f32.mrf.mxu0
    %v461 = vadd.f32 0.0, %v460
    %v462 = vpop.f32.mrf.mxu0
    %v463 = vadd.f32 0.0, %v462
    %464 = vmatmul.bf16.gmra.mxu0 %v202
    %v465 = vpop.f32.mrf.mxu0
    %v466 = vadd.f32 0.0, %v465
    %v467 = vpop.f32.mrf.mxu0
    %v468 = vadd.f32 0.0, %v467
    %469 = vmatmul.bf16.gmra.mxu0 %v203
    %v470 = vpop.f32.mrf.mxu0
    %v471 = vadd.f32 0.0, %v470
    %v472 = vpop.f32.mrf.mxu0
    %v473 = vadd.f32 0.0, %v472
    %474 = vmatmul.bf16.gmra.mxu0 %v204
    %v475 = vpop.f32.mrf.mxu0
    %v476 = vadd.f32 0.0, %v475
    %v477 = vpop.f32.mrf.mxu0
    %v478 = vadd.f32 0.0, %v477
    %479 = vmatmul.bf16.gmra.mxu0 %v205
    %v480 = vpop.f32.mrf.mxu0
    %v481 = vadd.f32 0.0, %v480
    %v482 = vpop.f32.mrf.mxu0
    %v483 = vadd.f32 0.0, %v482
    %484 = vmatmul.bf16.gmra.mxu0 %v206
    %v485 = vpop.f32.mrf.mxu0
    %v486 = vadd.f32 0.0, %v485
    %v487 = vpop.f32.mrf.mxu0
    %v488 = vadd.f32 0.0, %v487
    %489 = vdwg.mxu0
    %vm506 = vcmask 1046528
    %v507 = vrot.slane %v402, 1
    %v508 = vrot.slane %v404, 1
    %v509 = vsel %vm506, %v507, %v508
    %v510 = vrot.slane %v407, 1
    %v511 = vrot.slane %v409, 1
    %v512 = vsel %vm506, %v510, %v511
    %v513 = vrot.slane %v412, 1
    %v514 = vrot.slane %v414, 1
    %v515 = vsel %vm506, %v513, %v514
    %v516 = vrot.slane %v417, 1
    %v517 = vrot.slane %v419, 1
    %v518 = vsel %vm506, %v516, %v517
    %v519 = vrot.slane %v422, 1
    %v520 = vrot.slane %v424, 1
    %v521 = vsel %vm506, %v519, %v520
    %v522 = vrot.slane %v427, 1
    %v523 = vrot.slane %v429, 1
    %v524 = vsel %vm506, %v522, %v523
    %v525 = vrot.slane %v432, 1
    %v526 = vrot.slane %v434, 1
    %v527 = vsel %vm506, %v525, %v526
    %v528 = vrot.slane %v437, 1
    %v529 = vrot.slane %v439, 1
    %v530 = vsel %vm506, %v528, %v529
    %v547 = vadd.f32 %v353, %v509
    %v548 = vadd.f32 %v355, %v508
    %v549 = vadd.f32 %v358, %v512
    %v550 = vadd.f32 %v360, %v511
    %v551 = vadd.f32 %v363, %v515
    %v552 = vadd.f32 %v365, %v514
    %v553 = vadd.f32 %v368, %v518
    %v554 = vadd.f32 %v370, %v517
    %v555 = vadd.f32 %v373, %v521
    %v556 = vadd.f32 %v375, %v520
    %v557 = vadd.f32 %v378, %v524
    %v558 = vadd.f32 %v380, %v523
    %v559 = vadd.f32 %v383, %v527
    %v560 = vadd.f32 %v385, %v526
    %v561 = vadd.f32 %v388, %v530
    %v562 = vadd.f32 %v390, %v529
    %vm579 = vcmask 1045504
    %v580 = vrot.slane %v451, 2
    %v581 = vrot.slane %v453, 2
    %v582 = vsel %vm579, %v580, %v581
    %v583 = vrot.slane %v456, 2
    %v584 = vrot.slane %v458, 2
    %v585 = vsel %vm579, %v583, %v584
    %v586 = vrot.slane %v461, 2
    %v587 = vrot.slane %v463, 2
    %v588 = vsel %vm579, %v586, %v587
    %v589 = vrot.slane %v466, 2
    %v590 = vrot.slane %v468, 2
    %v591 = vsel %vm579, %v589, %v590
    %v592 = vrot.slane %v471, 2
    %v593 = vrot.slane %v473, 2
    %v594 = vsel %vm579, %v592, %v593
    %v595 = vrot.slane %v476, 2
    %v596 = vrot.slane %v478, 2
    %v597 = vsel %vm579, %v595, %v596
    %v598 = vrot.slane %v481, 2
    %v599 = vrot.slane %v483, 2
    %v600 = vsel %vm579, %v598, %v599
    %v601 = vrot.slane %v486, 2
    %v602 = vrot.slane %v488, 2
    %v603 = vsel %vm579, %v601, %v602
    %v620 = vadd.f32 %v547, %v582
    %v621 = vadd.f32 %v548, %v581
    %v622 = vadd.f32 %v549, %v585
    %v623 = vadd.f32 %v550, %v584
    %v624 = vadd.f32 %v551, %v588
    %v625 = vadd.f32 %v552, %v587
    %v626 = vadd.f32 %v553, %v591
    %v627 = vadd.f32 %v554, %v590
    %v628 = vadd.f32 %v555, %v594
    %v629 = vadd.f32 %v556, %v593
    %v630 = vadd.f32 %v557, %v597
    %v631 = vadd.f32 %v558, %v596
    %v632 = vadd.f32 %v559, %v600
    %v633 = vadd.f32 %v560, %v599
    %v634 = vadd.f32 %v561, %v603
    %v635 = vadd.f32 %v562, %v602
    %v636 = vsel %vm579, %v621, -inf
    %v637 = vmax.f32 %v620, %v636
    %v638 = vrot.slane %v637, 4
    %v639 = vmax.f32 %v637, %v638
    %v640 = vrot.slane %v639, 2
    %v641 = vmax.f32 %v639, %v640
    %v642 = vrot.slane %v641, 1
    %v643 = vmax.f32 %v641, %v642
    %v644 = vsel %vm579, %v623, -inf
    %v645 = vmax.f32 %v622, %v644
    %v646 = vrot.slane %v645, 4
    %v647 = vmax.f32 %v645, %v646
    %v648 = vrot.slane %v647, 2
    %v649 = vmax.f32 %v647, %v648
    %v650 = vrot.slane %v649, 1
    %v651 = vmax.f32 %v649, %v650
    %v652 = vsel %vm579, %v625, -inf
    %v653 = vmax.f32 %v624, %v652
    %v654 = vrot.slane %v653, 4
    %v655 = vmax.f32 %v653, %v654
    %v656 = vrot.slane %v655, 2
    %v657 = vmax.f32 %v655, %v656
    %v658 = vrot.slane %v657, 1
    %v659 = vmax.f32 %v657, %v658
    %v660 = vsel %vm579, %v627, -inf
    %v661 = vmax.f32 %v626, %v660
    %v662 = vrot.slane %v661, 4
    %v663 = vmax.f32 %v661, %v662
    %v664 = vrot.slane %v663, 2
    %v665 = vmax.f32 %v663, %v664
    %v666 = vrot.slane %v665, 1
    %v667 = vmax.f32 %v665, %v666
    %v668 = vsel %vm579, %v629, -inf
    %v669 = vmax.f32 %v628, %v668
    %v670 = vrot.slane %v669, 4
    %v671 = vmax.f32 %v669, %v670
    %v672 = vrot.slane %v671, 2
    %v673 = vmax.f32 %v671, %v672
    %v674 = vrot.slane %v673, 1
    %v675 = vmax.f32 %v673, %v674
    %v676 = vsel %vm579, %v631, -inf
    %v677 = vmax.f32 %v630, %v676
    %v678 = vrot.slane %v677, 4
    %v679 = vmax.f32 %v677, %v678
    %v680 = vrot.slane %v679, 2
    %v681 = vmax.f32 %v679, %v680
    %v682 = vrot.slane %v681, 1
    %v683 = vmax.f32 %v681, %v682
    %v684 = vsel %vm579, %v633, -inf
    %v685 = vmax.f32 %v632, %v684
    %v686 = vrot.slane %v685, 4
    %v687 = vmax.f32 %v685, %v686
    %v688 = vrot.slane %v687, 2
    %v689 = vmax.f32 %v687, %v688
    %v690 = vrot.slane %v689, 1
    %v691 = vmax.f32 %v689, %v690
    %v692 = vsel %vm579, %v635, -inf
    %v693 = vmax.f32 %v634, %v692
    %v694 = vrot.slane %v693, 4
    %v695 = vmax.f32 %v693, %v694
    %v696 = vrot.slane %v695, 2
    %v697 = vmax.f32 %v695, %v696
    %v698 = vrot.slane %v697, 1
    %v699 = vmax.f32 %v697, %v698
    %v700 = vld [vmem:[#allocation10] sm:$0x1]
    %v701 = vperm.slane %v700, 0
    %v702 = vadd.f32 %v643, %v701
    %v703 = vadd.f32 %v651, %v701
    %v704 = vadd.f32 %v659, %v701
    %v705 = vadd.f32 %v667, %v701
    %v706 = vadd.f32 %v675, %v701
    %v707 = vadd.f32 %v683, %v701
    %v708 = vadd.f32 %v691, %v701
    %v709 = vadd.f32 %v699, %v701
    %v710 = vmax.f32 %v702, 0.0
    %v711 = vmax.f32 %v703, 0.0
    %v712 = vmax.f32 %v704, 0.0
    %v713 = vmax.f32 %v705, 0.0
    %v714 = vmax.f32 %v706, 0.0
    %v715 = vmax.f32 %v707, 0.0
    %v716 = vmax.f32 %v708, 0.0
    %v717 = vmax.f32 %v709, 0.0
    %v718 = vld [vmem:[#allocation7] sm:$0xff]
    %v719 = vld [vmem:[#allocation7 + $0x8] sm:$0xff]
    %v720 = vld [vmem:[#allocation7 + $0x10] sm:$0xff]
    %v721 = vld [vmem:[#allocation7 + $0x18] sm:$0xff]
    %v722 = vld [vmem:[#allocation7 + $0x20] sm:$0xff]
    %v723 = vld [vmem:[#allocation7 + $0x28] sm:$0xff]
    %v724 = vld [vmem:[#allocation7 + $0x30] sm:$0xff]
    %v725 = vld [vmem:[#allocation7 + $0x38] sm:$0xff]
    %v726 = vld [vmem:[#allocation7 + $0x40] sm:$0xff]
    %v727 = vld [vmem:[#allocation7 + $0x48] sm:$0xff]
    %v728 = vld [vmem:[#allocation7 + $0x50] sm:$0xff]
    %v729 = vld [vmem:[#allocation7 + $0x58] sm:$0xff]
    %v730 = vld [vmem:[#allocation7 + $0x60] sm:$0xff]
    %v731 = vld [vmem:[#allocation7 + $0x68] sm:$0xff]
    %v732 = vld [vmem:[#allocation7 + $0x70] sm:$0xff]
    %v733 = vld [vmem:[#allocation7 + $0x78] sm:$0xff]
    %v734 = vld [vmem:[#allocation7 + $0x80] sm:$0xff]
    %v735 = vld [vmem:[#allocation7 + $0x88] sm:$0xff]
    %v736 = vld [vmem:[#allocation7 + $0x90] sm:$0xff]
    %v737 = vld [vmem:[#allocation7 + $0x98] sm:$0xff]
    %v738 = vld [vmem:[#allocation7 + $0xa0] sm:$0xff]
    %v739 = vld [vmem:[#allocation7 + $0xa8] sm:$0xff]
    %v740 = vld [vmem:[#allocation7 + $0xb0] sm:$0xff]
    %v741 = vld [vmem:[#allocation7 + $0xb8] sm:$0xff]
    %v742 = vld [vmem:[#allocation7 + $0xc0] sm:$0xff]
    %v743 = vld [vmem:[#allocation7 + $0xc8] sm:$0xff]
    %v744 = vld [vmem:[#allocation7 + $0xd0] sm:$0xff]
    %v745 = vld [vmem:[#allocation7 + $0xd8] sm:$0xff]
    %v746 = vld [vmem:[#allocation7 + $0xe0] sm:$0xff]
    %v747 = vld [vmem:[#allocation7 + $0xe8] sm:$0xff]
    %v748 = vld [vmem:[#allocation7 + $0xf0] sm:$0xff]
    %v749 = vld [vmem:[#allocation7 + $0xf8] sm:$0xff]
    %v782 = vunpack.c.l.b16 %v718
    %v783 = vunpack.c.h.b16 %v718
    %v784 = vunpack.c.l.b16 %v719
    %v785 = vunpack.c.h.b16 %v719
    %v786 = vunpack.c.l.b16 %v720
    %v787 = vunpack.c.h.b16 %v720
    %v788 = vunpack.c.l.b16 %v721
    %v789 = vunpack.c.h.b16 %v721
    %v790 = vunpack.c.l.b16 %v722
    %v791 = vunpack.c.h.b16 %v722
    %v792 = vunpack.c.l.b16 %v723
    %v793 = vunpack.c.h.b16 %v723
    %v794 = vunpack.c.l.b16 %v724
    %v795 = vunpack.c.h.b16 %v724
    %v796 = vunpack.c.l.b16 %v725
    %v797 = vunpack.c.h.b16 %v725
    %v798 = vunpack.c.l.b16 %v726
    %v799 = vunpack.c.h.b16 %v726
    %v800 = vunpack.c.l.b16 %v727
    %v801 = vunpack.c.h.b16 %v727
    %v802 = vunpack.c.l.b16 %v728
    %v803 = vunpack.c.h.b16 %v728
    %v804 = vunpack.c.l.b16 %v729
    %v805 = vunpack.c.h.b16 %v729
    %v806 = vunpack.c.l.b16 %v730
    %v807 = vunpack.c.h.b16 %v730
    %v808 = vunpack.c.l.b16 %v731
    %v809 = vunpack.c.h.b16 %v731
    %v810 = vunpack.c.l.b16 %v732
    %v811 = vunpack.c.h.b16 %v732
    %v812 = vunpack.c.l.b16 %v733
    %v813 = vunpack.c.h.b16 %v733
    %v814 = vunpack.c.l.b16 %v734
    %v815 = vunpack.c.h.b16 %v734
    %v816 = vunpack.c.l.b16 %v735
    %v817 = vunpack.c.h.b16 %v735
    %v818 = vunpack.c.l.b16 %v736
    %v819 = vunpack.c.h.b16 %v736
    %v820 = vunpack.c.l.b16 %v737
    %v821 = vunpack.c.h.b16 %v737
    %v822 = vunpack.c.l.b16 %v738
    %v823 = vunpack.c.h.b16 %v738
    %v824 = vunpack.c.l.b16 %v739
    %v825 = vunpack.c.h.b16 %v739
    %v826 = vunpack.c.l.b16 %v740
    %v827 = vunpack.c.h.b16 %v740
    %v828 = vunpack.c.l.b16 %v741
    %v829 = vunpack.c.h.b16 %v741
    %v830 = vunpack.c.l.b16 %v742
    %v831 = vunpack.c.h.b16 %v742
    %v832 = vunpack.c.l.b16 %v743
    %v833 = vunpack.c.h.b16 %v743
    %v834 = vunpack.c.l.b16 %v744
    %v835 = vunpack.c.h.b16 %v744
    %v836 = vunpack.c.l.b16 %v745
    %v837 = vunpack.c.h.b16 %v745
    %v838 = vunpack.c.l.b16 %v746
    %v839 = vunpack.c.h.b16 %v746
    %v840 = vunpack.c.l.b16 %v747
    %v841 = vunpack.c.h.b16 %v747
    %v842 = vunpack.c.l.b16 %v748
    %v843 = vunpack.c.h.b16 %v748
    %v844 = vunpack.c.l.b16 %v749
    %v845 = vunpack.c.h.b16 %v749
    %v846 = vpack.c.b16 %v786, %v782
    %v847 = vpack.c.b16 %v787, %v783
    %v848 = vpack.c.b16 %v788, %v784
    %v849 = vpack.c.b16 %v789, %v785
    %v850 = vpack.c.b16 %v794, %v790
    %v851 = vpack.c.b16 %v795, %v791
    %v852 = vpack.c.b16 %v796, %v792
    %v853 = vpack.c.b16 %v797, %v793
    %v854 = vpack.c.b16 %v802, %v798
    %v855 = vpack.c.b16 %v803, %v799
    %v856 = vpack.c.b16 %v804, %v800
    %v857 = vpack.c.b16 %v805, %v801
    %v858 = vpack.c.b16 %v810, %v806
    %v859 = vpack.c.b16 %v811, %v807
    %v860 = vpack.c.b16 %v812, %v808
    %v861 = vpack.c.b16 %v813, %v809
    %v862 = vpack.c.b16 %v818, %v814
    %v863 = vpack.c.b16 %v819, %v815
    %v864 = vpack.c.b16 %v820, %v816
    %v865 = vpack.c.b16 %v821, %v817
    %v866 = vpack.c.b16 %v826, %v822
    %v867 = vpack.c.b16 %v827, %v823
    %v868 = vpack.c.b16 %v828, %v824
    %v869 = vpack.c.b16 %v829, %v825
    %v870 = vpack.c.b16 %v834, %v830
    %v871 = vpack.c.b16 %v835, %v831
    %v872 = vpack.c.b16 %v836, %v832
    %v873 = vpack.c.b16 %v837, %v833
    %v874 = vpack.c.b16 %v842, %v838
    %v875 = vpack.c.b16 %v843, %v839
    %v876 = vpack.c.b16 %v844, %v840
    %v877 = vpack.c.b16 %v845, %v841
    %910 = vmatpush.bf16.msra.mxu0 %v874
    %911 = vmatpush.bf16.msra.mxu0 %v870
    %912 = vmatpush.bf16.msra.mxu0 %v866
    %913 = vmatpush.bf16.msra.mxu0 %v862
    %914 = vmatpush.bf16.msra.mxu0 %v858
    %915 = vmatpush.bf16.msra.mxu0 %v854
    %916 = vmatpush.bf16.msra.mxu0 %v850
    %917 = vmatpush.bf16.msra.mxu0 %v846
    %918 = vmatmul.bf16.gmra.mxu0 %v199
    %v919 = vpop.f32.mrf.mxu0
    %v920 = vadd.f32 0.0, %v919
    %v921 = vpop.f32.mrf.mxu0
    %v922 = vadd.f32 0.0, %v921
    %923 = vmatmul.bf16.gmra.mxu0 %v200
    %v924 = vpop.f32.mrf.mxu0
    %v925 = vadd.f32 0.0, %v924
    %v926 = vpop.f32.mrf.mxu0
    %v927 = vadd.f32 0.0, %v926
    %928 = vmatmul.bf16.gmra.mxu0 %v201
    %v929 = vpop.f32.mrf.mxu0
    %v930 = vadd.f32 0.0, %v929
    %v931 = vpop.f32.mrf.mxu0
    %v932 = vadd.f32 0.0, %v931
    %933 = vmatmul.bf16.gmra.mxu0 %v202
    %v934 = vpop.f32.mrf.mxu0
    %v935 = vadd.f32 0.0, %v934
    %v936 = vpop.f32.mrf.mxu0
    %v937 = vadd.f32 0.0, %v936
    %938 = vmatmul.bf16.gmra.mxu0 %v203
    %v939 = vpop.f32.mrf.mxu0
    %v940 = vadd.f32 0.0, %v939
    %v941 = vpop.f32.mrf.mxu0
    %v942 = vadd.f32 0.0, %v941
    %943 = vmatmul.bf16.gmra.mxu0 %v204
    %v944 = vpop.f32.mrf.mxu0
    %v945 = vadd.f32 0.0, %v944
    %v946 = vpop.f32.mrf.mxu0
    %v947 = vadd.f32 0.0, %v946
    %948 = vmatmul.bf16.gmra.mxu0 %v205
    %v949 = vpop.f32.mrf.mxu0
    %v950 = vadd.f32 0.0, %v949
    %v951 = vpop.f32.mrf.mxu0
    %v952 = vadd.f32 0.0, %v951
    %953 = vmatmul.bf16.gmra.mxu0 %v206
    %v954 = vpop.f32.mrf.mxu0
    %v955 = vadd.f32 0.0, %v954
    %v956 = vpop.f32.mrf.mxu0
    %v957 = vadd.f32 0.0, %v956
    %958 = vdwg.mxu0
    %959 = vmatpush.bf16.msra.mxu0 %v875
    %960 = vmatpush.bf16.msra.mxu0 %v871
    %961 = vmatpush.bf16.msra.mxu0 %v867
    %962 = vmatpush.bf16.msra.mxu0 %v863
    %963 = vmatpush.bf16.msra.mxu0 %v859
    %964 = vmatpush.bf16.msra.mxu0 %v855
    %965 = vmatpush.bf16.msra.mxu0 %v851
    %966 = vmatpush.bf16.msra.mxu0 %v847
    %967 = vmatmul.bf16.gmra.mxu0 %v199
    %v968 = vpop.f32.mrf.mxu0
    %v969 = vadd.f32 0.0, %v968
    %v970 = vpop.f32.mrf.mxu0
    %v971 = vadd.f32 0.0, %v970
    %972 = vmatmul.bf16.gmra.mxu0 %v200
    %v973 = vpop.f32.mrf.mxu0
    %v974 = vadd.f32 0.0, %v973
    %v975 = vpop.f32.mrf.mxu0
    %v976 = vadd.f32 0.0, %v975
    %977 = vmatmul.bf16.gmra.mxu0 %v201
    %v978 = vpop.f32.mrf.mxu0
    %v979 = vadd.f32 0.0, %v978
    %v980 = vpop.f32.mrf.mxu0
    %v981 = vadd.f32 0.0, %v980
    %982 = vmatmul.bf16.gmra.mxu0 %v202
    %v983 = vpop.f32.mrf.mxu0
    %v984 = vadd.f32 0.0, %v983
    %v985 = vpop.f32.mrf.mxu0
    %v986 = vadd.f32 0.0, %v985
    %987 = vmatmul.bf16.gmra.mxu0 %v203
    %v988 = vpop.f32.mrf.mxu0
    %v989 = vadd.f32 0.0, %v988
    %v990 = vpop.f32.mrf.mxu0
    %v991 = vadd.f32 0.0, %v990
    %992 = vmatmul.bf16.gmra.mxu0 %v204
    %v993 = vpop.f32.mrf.mxu0
    %v994 = vadd.f32 0.0, %v993
    %v995 = vpop.f32.mrf.mxu0
    %v996 = vadd.f32 0.0, %v995
    %997 = vmatmul.bf16.gmra.mxu0 %v205
    %v998 = vpop.f32.mrf.mxu0
    %v999 = vadd.f32 0.0, %v998
    %v1000 = vpop.f32.mrf.mxu0
    %v1001 = vadd.f32 0.0, %v1000
    %1002 = vmatmul.bf16.gmra.mxu0 %v206
    %v1003 = vpop.f32.mrf.mxu0
    %v1004 = vadd.f32 0.0, %v1003
    %v1005 = vpop.f32.mrf.mxu0
    %v1006 = vadd.f32 0.0, %v1005
    %1007 = vdwg.mxu0
    %1008 = vmatpush.bf16.msra.mxu0 %v876
    %1009 = vmatpush.bf16.msra.mxu0 %v872
    %1010 = vmatpush.bf16.msra.mxu0 %v868
    %1011 = vmatpush.bf16.msra.mxu0 %v864
    %1012 = vmatpush.bf16.msra.mxu0 %v860
    %1013 = vmatpush.bf16.msra.mxu0 %v856
    %1014 = vmatpush.bf16.msra.mxu0 %v852
    %1015 = vmatpush.bf16.msra.mxu0 %v848
    %1016 = vmatmul.bf16.gmra.mxu0 %v199
    %v1017 = vpop.f32.mrf.mxu0
    %v1018 = vadd.f32 0.0, %v1017
    %v1019 = vpop.f32.mrf.mxu0
    %v1020 = vadd.f32 0.0, %v1019
    %1021 = vmatmul.bf16.gmra.mxu0 %v200
    %v1022 = vpop.f32.mrf.mxu0
    %v1023 = vadd.f32 0.0, %v1022
    %v1024 = vpop.f32.mrf.mxu0
    %v1025 = vadd.f32 0.0, %v1024
    %1026 = vmatmul.bf16.gmra.mxu0 %v201
    %v1027 = vpop.f32.mrf.mxu0
    %v1028 = vadd.f32 0.0, %v1027
    %v1029 = vpop.f32.mrf.mxu0
    %v1030 = vadd.f32 0.0, %v1029
    %1031 = vmatmul.bf16.gmra.mxu0 %v202
    %v1032 = vpop.f32.mrf.mxu0
    %v1033 = vadd.f32 0.0, %v1032
    %v1034 = vpop.f32.mrf.mxu0
    %v1035 = vadd.f32 0.0, %v1034
    %1036 = vmatmul.bf16.gmra.mxu0 %v203
    %v1037 = vpop.f32.mrf.mxu0
    %v1038 = vadd.f32 0.0, %v1037
    %v1039 = vpop.f32.mrf.mxu0
    %v1040 = vadd.f32 0.0, %v1039
    %1041 = vmatmul.bf16.gmra.mxu0 %v204
    %v1042 = vpop.f32.mrf.mxu0
    %v1043 = vadd.f32 0.0, %v1042
    %v1044 = vpop.f32.mrf.mxu0
    %v1045 = vadd.f32 0.0, %v1044
    %1046 = vmatmul.bf16.gmra.mxu0 %v205
    %v1047 = vpop.f32.mrf.mxu0
    %v1048 = vadd.f32 0.0, %v1047
    %v1049 = vpop.f32.mrf.mxu0
    %v1050 = vadd.f32 0.0, %v1049
    %1051 = vmatmul.bf16.gmra.mxu0 %v206
    %v1052 = vpop.f32.mrf.mxu0
    %v1053 = vadd.f32 0.0, %v1052
    %v1054 = vpop.f32.mrf.mxu0
    %v1055 = vadd.f32 0.0, %v1054
    %1056 = vdwg.mxu0
    %1057 = vmatpush.bf16.msra.mxu0 %v877
    %1058 = vmatpush.bf16.msra.mxu0 %v873
    %1059 = vmatpush.bf16.msra.mxu0 %v869
    %1060 = vmatpush.bf16.msra.mxu0 %v865
    %1061 = vmatpush.bf16.msra.mxu0 %v861
    %1062 = vmatpush.bf16.msra.mxu0 %v857
    %1063 = vmatpush.bf16.msra.mxu0 %v853
    %1064 = vmatpush.bf16.msra.mxu0 %v849
    %1065 = vmatmul.bf16.gmra.mxu0 %v199
    %v1066 = vpop.f32.mrf.mxu0
    %v1067 = vadd.f32 0.0, %v1066
    %v1068 = vpop.f32.mrf.mxu0
    %v1069 = vadd.f32 0.0, %v1068
    %1070 = vmatmul.bf16.gmra.mxu0 %v200
    %v1071 = vpop.f32.mrf.mxu0
    %v1072 = vadd.f32 0.0, %v1071
    %v1073 = vpop.f32.mrf.mxu0
    %v1074 = vadd.f32 0.0, %v1073
    %1075 = vmatmul.bf16.gmra.mxu0 %v201
    %v1076 = vpop.f32.mrf.mxu0
    %v1077 = vadd.f32 0.0, %v1076
    %v1078 = vpop.f32.mrf.mxu0
    %v1079 = vadd.f32 0.0, %v1078
    %1080 = vmatmul.bf16.gmra.mxu0 %v202
    %v1081 = vpop.f32.mrf.mxu0
    %v1082 = vadd.f32 0.0, %v1081
    %v1083 = vpop.f32.mrf.mxu0
    %v1084 = vadd.f32 0.0, %v1083
    %1085 = vmatmul.bf16.gmra.mxu0 %v203
    %v1086 = vpop.f32.mrf.mxu0
    %v1087 = vadd.f32 0.0, %v1086
    %v1088 = vpop.f32.mrf.mxu0
    %v1089 = vadd.f32 0.0, %v1088
    %1090 = vmatmul.bf16.gmra.mxu0 %v204
    %v1091 = vpop.f32.mrf.mxu0
    %v1092 = vadd.f32 0.0, %v1091
    %v1093 = vpop.f32.mrf.mxu0
    %v1094 = vadd.f32 0.0, %v1093
    %1095 = vmatmul.bf16.gmra.mxu0 %v205
    %v1096 = vpop.f32.mrf.mxu0
    %v1097 = vadd.f32 0.0, %v1096
    %v1098 = vpop.f32.mrf.mxu0
    %v1099 = vadd.f32 0.0, %v1098
    %1100 = vmatmul.bf16.gmra.mxu0 %v206
    %v1101 = vpop.f32.mrf.mxu0
    %v1102 = vadd.f32 0.0, %v1101
    %v1103 = vpop.f32.mrf.mxu0
    %v1104 = vadd.f32 0.0, %v1103
    %1105 = vdwg.mxu0
    %v1122 = vrot.slane %v969, 1
    %v1123 = vrot.slane %v971, 1
    %v1124 = vsel %vm506, %v1122, %v1123
    %v1125 = vrot.slane %v974, 1
    %v1126 = vrot.slane %v976, 1
    %v1127 = vsel %vm506, %v1125, %v1126
    %v1128 = vrot.slane %v979, 1
    %v1129 = vrot.slane %v981, 1
    %v1130 = vsel %vm506, %v1128, %v1129
    %v1131 = vrot.slane %v984, 1
    %v1132 = vrot.slane %v986, 1
    %v1133 = vsel %vm506, %v1131, %v1132
    %v1134 = vrot.slane %v989, 1
    %v1135 = vrot.slane %v991, 1
    %v1136 = vsel %vm506, %v1134, %v1135
    %v1137 = vrot.slane %v994, 1
    %v1138 = vrot.slane %v996, 1
    %v1139 = vsel %vm506, %v1137, %v1138
    %v1140 = vrot.slane %v999, 1
    %v1141 = vrot.slane %v1001, 1
    %v1142 = vsel %vm506, %v1140, %v1141
    %v1143 = vrot.slane %v1004, 1
    %v1144 = vrot.slane %v1006, 1
    %v1145 = vsel %vm506, %v1143, %v1144
    %v1162 = vadd.f32 %v920, %v1124
    %v1163 = vadd.f32 %v922, %v1123
    %v1164 = vadd.f32 %v925, %v1127
    %v1165 = vadd.f32 %v927, %v1126
    %v1166 = vadd.f32 %v930, %v1130
    %v1167 = vadd.f32 %v932, %v1129
    %v1168 = vadd.f32 %v935, %v1133
    %v1169 = vadd.f32 %v937, %v1132
    %v1170 = vadd.f32 %v940, %v1136
    %v1171 = vadd.f32 %v942, %v1135
    %v1172 = vadd.f32 %v945, %v1139
    %v1173 = vadd.f32 %v947, %v1138
    %v1174 = vadd.f32 %v950, %v1142
    %v1175 = vadd.f32 %v952, %v1141
    %v1176 = vadd.f32 %v955, %v1145
    %v1177 = vadd.f32 %v957, %v1144
    %v1194 = vrot.slane %v1018, 2
    %v1195 = vrot.slane %v1020, 2
    %v1196 = vsel %vm579, %v1194, %v1195
    %v1197 = vrot.slane %v1023, 2
    %v1198 = vrot.slane %v1025, 2
    %v1199 = vsel %vm579, %v1197, %v1198
    %v1200 = vrot.slane %v1028, 2
    %v1201 = vrot.slane %v1030, 2
    %v1202 = vsel %vm579, %v1200, %v1201
    %v1203 = vrot.slane %v1033, 2
    %v1204 = vrot.slane %v1035, 2
    %v1205 = vsel %vm579, %v1203, %v1204
    %v1206 = vrot.slane %v1038, 2
    %v1207 = vrot.slane %v1040, 2
    %v1208 = vsel %vm579, %v1206, %v1207
    %v1209 = vrot.slane %v1043, 2
    %v1210 = vrot.slane %v1045, 2
    %v1211 = vsel %vm579, %v1209, %v1210
    %v1212 = vrot.slane %v1048, 2
    %v1213 = vrot.slane %v1050, 2
    %v1214 = vsel %vm579, %v1212, %v1213
    %v1215 = vrot.slane %v1053, 2
    %v1216 = vrot.slane %v1055, 2
    %v1217 = vsel %vm579, %v1215, %v1216
    %v1234 = vadd.f32 %v1162, %v1196
    %v1235 = vadd.f32 %v1163, %v1195
    %v1236 = vadd.f32 %v1164, %v1199
    %v1237 = vadd.f32 %v1165, %v1198
    %v1238 = vadd.f32 %v1166, %v1202
    %v1239 = vadd.f32 %v1167, %v1201
    %v1240 = vadd.f32 %v1168, %v1205
    %v1241 = vadd.f32 %v1169, %v1204
    %v1242 = vadd.f32 %v1170, %v1208
    %v1243 = vadd.f32 %v1171, %v1207
    %v1244 = vadd.f32 %v1172, %v1211
    %v1245 = vadd.f32 %v1173, %v1210
    %v1246 = vadd.f32 %v1174, %v1214
    %v1247 = vadd.f32 %v1175, %v1213
    %v1248 = vadd.f32 %v1176, %v1217
    %v1249 = vadd.f32 %v1177, %v1216
    %vm1266 = vcmask 1044480
    %v1267 = vrot.slane %v1067, 3
    %v1268 = vrot.slane %v1069, 3
    %v1269 = vsel %vm1266, %v1267, %v1268
    %v1270 = vrot.slane %v1072, 3
    %v1271 = vrot.slane %v1074, 3
    %v1272 = vsel %vm1266, %v1270, %v1271
    %v1273 = vrot.slane %v1077, 3
    %v1274 = vrot.slane %v1079, 3
    %v1275 = vsel %vm1266, %v1273, %v1274
    %v1276 = vrot.slane %v1082, 3
    %v1277 = vrot.slane %v1084, 3
    %v1278 = vsel %vm1266, %v1276, %v1277
    %v1279 = vrot.slane %v1087, 3
    %v1280 = vrot.slane %v1089, 3
    %v1281 = vsel %vm1266, %v1279, %v1280
    %v1282 = vrot.slane %v1092, 3
    %v1283 = vrot.slane %v1094, 3
    %v1284 = vsel %vm1266, %v1282, %v1283
    %v1285 = vrot.slane %v1097, 3
    %v1286 = vrot.slane %v1099, 3
    %v1287 = vsel %vm1266, %v1285, %v1286
    %v1288 = vrot.slane %v1102, 3
    %v1289 = vrot.slane %v1104, 3
    %v1290 = vsel %vm1266, %v1288, %v1289
    %v1307 = vadd.f32 %v1234, %v1269
    %v1308 = vadd.f32 %v1235, %v1268
    %v1309 = vadd.f32 %v1236, %v1272
    %v1310 = vadd.f32 %v1237, %v1271
    %v1311 = vadd.f32 %v1238, %v1275
    %v1312 = vadd.f32 %v1239, %v1274
    %v1313 = vadd.f32 %v1240, %v1278
    %v1314 = vadd.f32 %v1241, %v1277
    %v1315 = vadd.f32 %v1242, %v1281
    %v1316 = vadd.f32 %v1243, %v1280
    %v1317 = vadd.f32 %v1244, %v1284
    %v1318 = vadd.f32 %v1245, %v1283
    %v1319 = vadd.f32 %v1246, %v1287
    %v1320 = vadd.f32 %v1247, %v1286
    %v1321 = vadd.f32 %v1248, %v1290
    %v1322 = vadd.f32 %v1249, %v1289
    %v1323 = vsel %vm1266, %v1308, -inf
    %v1324 = vmax.f32 %v1307, %v1323
    %v1325 = vrot.slane %v1324, 4
    %v1326 = vmax.f32 %v1324, %v1325
    %v1327 = vrot.slane %v1326, 2
    %v1328 = vmax.f32 %v1326, %v1327
    %v1329 = vrot.slane %v1328, 1
    %v1330 = vmax.f32 %v1328, %v1329
    %v1331 = vsel %vm1266, %v1310, -inf
    %v1332 = vmax.f32 %v1309, %v1331
    %v1333 = vrot.slane %v1332, 4
    %v1334 = vmax.f32 %v1332, %v1333
    %v1335 = vrot.slane %v1334, 2
    %v1336 = vmax.f32 %v1334, %v1335
    %v1337 = vrot.slane %v1336, 1
    %v1338 = vmax.f32 %v1336, %v1337
    %v1339 = vsel %vm1266, %v1312, -inf
    %v1340 = vmax.f32 %v1311, %v1339
    %v1341 = vrot.slane %v1340, 4
    %v1342 = vmax.f32 %v1340, %v1341
    %v1343 = vrot.slane %v1342, 2
    %v1344 = vmax.f32 %v1342, %v1343
    %v1345 = vrot.slane %v1344, 1
    %v1346 = vmax.f32 %v1344, %v1345
    %v1347 = vsel %vm1266, %v1314, -inf
    %v1348 = vmax.f32 %v1313, %v1347
    %v1349 = vrot.slane %v1348, 4
    %v1350 = vmax.f32 %v1348, %v1349
    %v1351 = vrot.slane %v1350, 2
    %v1352 = vmax.f32 %v1350, %v1351
    %v1353 = vrot.slane %v1352, 1
    %v1354 = vmax.f32 %v1352, %v1353
    %v1355 = vsel %vm1266, %v1316, -inf
    %v1356 = vmax.f32 %v1315, %v1355
    %v1357 = vrot.slane %v1356, 4
    %v1358 = vmax.f32 %v1356, %v1357
    %v1359 = vrot.slane %v1358, 2
    %v1360 = vmax.f32 %v1358, %v1359
    %v1361 = vrot.slane %v1360, 1
    %v1362 = vmax.f32 %v1360, %v1361
    %v1363 = vsel %vm1266, %v1318, -inf
    %v1364 = vmax.f32 %v1317, %v1363
    %v1365 = vrot.slane %v1364, 4
    %v1366 = vmax.f32 %v1364, %v1365
    %v1367 = vrot.slane %v1366, 2
    %v1368 = vmax.f32 %v1366, %v1367
    %v1369 = vrot.slane %v1368, 1
    %v1370 = vmax.f32 %v1368, %v1369
    %v1371 = vsel %vm1266, %v1320, -inf
    %v1372 = vmax.f32 %v1319, %v1371
    %v1373 = vrot.slane %v1372, 4
    %v1374 = vmax.f32 %v1372, %v1373
    %v1375 = vrot.slane %v1374, 2
    %v1376 = vmax.f32 %v1374, %v1375
    %v1377 = vrot.slane %v1376, 1
    %v1378 = vmax.f32 %v1376, %v1377
    %v1379 = vsel %vm1266, %v1322, -inf
    %v1380 = vmax.f32 %v1321, %v1379
    %v1381 = vrot.slane %v1380, 4
    %v1382 = vmax.f32 %v1380, %v1381
    %v1383 = vrot.slane %v1382, 2
    %v1384 = vmax.f32 %v1382, %v1383
    %v1385 = vrot.slane %v1384, 1
    %v1386 = vmax.f32 %v1384, %v1385
    %v1387 = vld [vmem:[#allocation10 + $0x1] sm:$0x1]
    %v1388 = vperm.slane %v1387, 0
    %v1389 = vadd.f32 %v1330, %v1388
    %v1390 = vadd.f32 %v1338, %v1388
    %v1391 = vadd.f32 %v1346, %v1388
    %v1392 = vadd.f32 %v1354, %v1388
    %v1393 = vadd.f32 %v1362, %v1388
    %v1394 = vadd.f32 %v1370, %v1388
    %v1395 = vadd.f32 %v1378, %v1388
    %v1396 = vadd.f32 %v1386, %v1388
    %v1397 = vmax.f32 %v1389, 0.0
    %v1398 = vmax.f32 %v1390, 0.0
    %v1399 = vmax.f32 %v1391, 0.0
    %v1400 = vmax.f32 %v1392, 0.0
    %v1401 = vmax.f32 %v1393, 0.0
    %v1402 = vmax.f32 %v1394, 0.0
    %v1403 = vmax.f32 %v1395, 0.0
    %v1404 = vmax.f32 %v1396, 0.0
    %v1405 = vld [vmem:[#allocation8] sm:$0xff]
    %v1406 = vld [vmem:[#allocation8 + $0x8] sm:$0xff]
    %v1407 = vld [vmem:[#allocation8 + $0x10] sm:$0xf]
    %v1408 = vld [vmem:[#allocation8 + $0x14] sm:$0xff]
    %v1409 = vld [vmem:[#allocation8 + $0x1c] sm:$0xff]
    %v1410 = vld [vmem:[#allocation8 + $0x24] sm:$0xf]
    %v1411 = vld [vmem:[#allocation8 + $0x28] sm:$0xff]
    %v1412 = vld [vmem:[#allocation8 + $0x30] sm:$0xff]
    %v1413 = vld [vmem:[#allocation8 + $0x38] sm:$0xf]
    %v1414 = vld [vmem:[#allocation8 + $0x3c] sm:$0xff]
    %v1415 = vld [vmem:[#allocation8 + $0x44] sm:$0xff]
    %v1416 = vld [vmem:[#allocation8 + $0x4c] sm:$0xf]
    %v1417 = vld [vmem:[#allocation8 + $0x50] sm:$0xff]
    %v1418 = vld [vmem:[#allocation8 + $0x58] sm:$0xff]
    %v1419 = vld [vmem:[#allocation8 + $0x60] sm:$0xf]
    %v1420 = vld [vmem:[#allocation8 + $0x64] sm:$0xff]
    %v1421 = vld [vmem:[#allocation8 + $0x6c] sm:$0xff]
    %v1422 = vld [vmem:[#allocation8 + $0x74] sm:$0xf]
    %v1423 = vld [vmem:[#allocation8 + $0x78] sm:$0xff]
    %v1424 = vld [vmem:[#allocation8 + $0x80] sm:$0xff]
    %v1425 = vld [vmem:[#allocation8 + $0x88] sm:$0xf]
    %v1426 = vld [vmem:[#allocation8 + $0x8c] sm:$0xff]
    %v1427 = vld [vmem:[#allocation8 + $0x94] sm:$0xff]
    %v1428 = vld [vmem:[#allocation8 + $0x9c] sm:$0xf]
    %v1429 = vld [vmem:[#allocation8 + $0xa0] sm:$0xff]
    %v1430 = vld [vmem:[#allocation8 + $0xa8] sm:$0xff]
    %v1431 = vld [vmem:[#allocation8 + $0xb0] sm:$0xf]
    %v1432 = vld [vmem:[#allocation8 + $0xb4] sm:$0xff]
    %v1433 = vld [vmem:[#allocation8 + $0xbc] sm:$0xff]
    %v1434 = vld [vmem:[#allocation8 + $0xc4] sm:$0xf]
    %v1435 = vld [vmem:[#allocation8 + $0xc8] sm:$0xff]
    %v1436 = vld [vmem:[#allocation8 + $0xd0] sm:$0xff]
    %v1437 = vld [vmem:[#allocation8 + $0xd8] sm:$0xf]
    %v1438 = vld [vmem:[#allocation8 + $0xdc] sm:$0xff]
    %v1439 = vld [vmem:[#allocation8 + $0xe4] sm:$0xff]
    %v1440 = vld [vmem:[#allocation8 + $0xec] sm:$0xf]
    %v1441 = vld [vmem:[#allocation8 + $0xf0] sm:$0xff]
    %v1442 = vld [vmem:[#allocation8 + $0xf8] sm:$0xff]
    %v1443 = vld [vmem:[#allocation8 + $0x100] sm:$0xf]
    %v1444 = vld [vmem:[#allocation8 + $0x104] sm:$0xff]
    %v1445 = vld [vmem:[#allocation8 + $0x10c] sm:$0xff]
    %v1446 = vld [vmem:[#allocation8 + $0x114] sm:$0xf]
    %v1447 = vld [vmem:[#allocation8 + $0x118] sm:$0xff]
    %v1448 = vld [vmem:[#allocation8 + $0x120] sm:$0xff]
    %v1449 = vld [vmem:[#allocation8 + $0x128] sm:$0xf]
    %v1450 = vld [vmem:[#allocation8 + $0x12c] sm:$0xff]
    %v1451 = vld [vmem:[#allocation8 + $0x134] sm:$0xff]
    %v1452 = vld [vmem:[#allocation8 + $0x13c] sm:$0xf]
    %v1501 = vunpack.c.l.b16 %v1405
    %v1502 = vunpack.c.h.b16 %v1405
    %v1503 = vunpack.c.l.b16 %v1406
    %v1504 = vunpack.c.h.b16 %v1406
    %v1505 = vunpack.c.l.b16 %v1407
    %v1506 = vunpack.c.l.b16 %v1408
    %v1507 = vunpack.c.h.b16 %v1408
    %v1508 = vunpack.c.l.b16 %v1409
    %v1509 = vunpack.c.h.b16 %v1409
    %v1510 = vunpack.c.l.b16 %v1410
    %v1511 = vunpack.c.l.b16 %v1411
    %v1512 = vunpack.c.h.b16 %v1411
    %v1513 = vunpack.c.l.b16 %v1412
    %v1514 = vunpack.c.h.b16 %v1412
    %v1515 = vunpack.c.l.b16 %v1413
    %v1516 = vunpack.c.l.b16 %v1414
    %v1517 = vunpack.c.h.b16 %v1414
    %v1518 = vunpack.c.l.b16 %v1415
    %v1519 = vunpack.c.h.b16 %v1415
    %v1520 = vunpack.c.l.b16 %v1416
    %v1521 = vunpack.c.l.b16 %v1417
    %v1522 = vunpack.c.h.b16 %v1417
    %v1523 = vunpack.c.l.b16 %v1418
    %v1524 = vunpack.c.h.b16 %v1418
    %v1525 = vunpack.c.l.b16 %v1419
    %v1526 = vunpack.c.l.b16 %v1420
    %v1527 = vunpack.c.h.b16 %v1420
    %v1528 = vunpack.c.l.b16 %v1421
    %v1529 = vunpack.c.h.b16 %v1421
    %v1530 = vunpack.c.l.b16 %v1422
    %v1531 = vunpack.c.l.b16 %v1423
    %v1532 = vunpack.c.h.b16 %v1423
    %v1533 = vunpack.c.l.b16 %v1424
    %v1534 = vunpack.c.h.b16 %v1424
    %v1535 = vunpack.c.l.b16 %v1425
    %v1536 = vunpack.c.l.b16 %v1426
    %v1537 = vunpack.c.h.b16 %v1426
    %v1538 = vunpack.c.l.b16 %v1427
    %v1539 = vunpack.c.h.b16 %v1427
    %v1540 = vunpack.c.l.b16 %v1428
    %v1541 = vunpack.c.l.b16 %v1429
    %v1542 = vunpack.c.h.b16 %v1429
    %v1543 = vunpack.c.l.b16 %v1430
    %v1544 = vunpack.c.h.b16 %v1430
    %v1545 = vunpack.c.l.b16 %v1431
    %v1546 = vunpack.c.l.b16 %v1432
    %v1547 = vunpack.c.h.b16 %v1432
    %v1548 = vunpack.c.l.b16 %v1433
    %v1549 = vunpack.c.h.b16 %v1433
    %v1550 = vunpack.c.l.b16 %v1434
    %v1551 = vunpack.c.l.b16 %v1435
    %v1552 = vunpack.c.h.b16 %v1435
    %v1553 = vunpack.c.l.b16 %v1436
    %v1554 = vunpack.c.h.b16 %v1436
    %v1555 = vunpack.c.l.b16 %v1437
    %v1556 = vunpack.c.l.b16 %v1438
    %v1557 = vunpack.c.h.b16 %v1438
    %v1558 = vunpack.c.l.b16 %v1439
    %v1559 = vunpack.c.h.b16 %v1439
    %v1560 = vunpack.c.l.b16 %v1440
    %v1561 = vunpack.c.l.b16 %v1441
    %v1562 = vunpack.c.h.b16 %v1441
    %v1563 = vunpack.c.l.b16 %v1442
    %v1564 = vunpack.c.h.b16 %v1442
    %v1565 = vunpack.c.l.b16 %v1443
    %v1566 = vunpack.c.l.b16 %v1444
    %v1567 = vunpack.c.h.b16 %v1444
    %v1568 = vunpack.c.l.b16 %v1445
    %v1569 = vunpack.c.h.b16 %v1445
    %v1570 = vunpack.c.l.b16 %v1446
    %v1571 = vunpack.c.l.b16 %v1447
    %v1572 = vunpack.c.h.b16 %v1447
    %v1573 = vunpack.c.l.b16 %v1448
    %v1574 = vunpack.c.h.b16 %v1448
    %v1575 = vunpack.c.l.b16 %v1449
    %v1576 = vunpack.c.l.b16 %v1450
    %v1577 = vunpack.c.h.b16 %v1450
    %v1578 = vunpack.c.l.b16 %v1451
    %v1579 = vunpack.c.h.b16 %v1451
    %v1580 = vunpack.c.l.b16 %v1452
    %v1581 = vpack.c.b16 %v1506, %v1501
    %v1582 = vpack.c.b16 %v1507, %v1502
    %v1583 = vpack.c.b16 %v1508, %v1503
    %v1584 = vpack.c.b16 %v1509, %v1504
    %v1585 = vpack.c.b16 %v1510, %v1505
    %v1586 = vpack.c.b16 %v1516, %v1511
    %v1587 = vpack.c.b16 %v1517, %v1512
    %v1588 = vpack.c.b16 %v1518, %v1513
    %v1589 = vpack.c.b16 %v1519, %v1514
    %v1590 = vpack.c.b16 %v1520, %v1515
    %v1591 = vpack.c.b16 %v1526, %v1521
    %v1592 = vpack.c.b16 %v1527, %v1522
    %v1593 = vpack.c.b16 %v1528, %v1523
    %v1594 = vpack.c.b16 %v1529, %v1524
    %v1595 = vpack.c.b16 %v1530, %v1525
    %v1596 = vpack.c.b16 %v1536, %v1531
    %v1597 = vpack.c.b16 %v1537, %v1532
    %v1598 = vpack.c.b16 %v1538, %v1533
    %v1599 = vpack.c.b16 %v1539, %v1534
    %v1600 = vpack.c.b16 %v1540, %v1535
    %v1601 = vpack.c.b16 %v1546, %v1541
    %v1602 = vpack.c.b16 %v1547, %v1542
    %v1603 = vpack.c.b16 %v1548, %v1543
    %v1604 = vpack.c.b16 %v1549, %v1544
    %v1605 = vpack.c.b16 %v1550, %v1545
    %v1606 = vpack.c.b16 %v1556, %v1551
    %v1607 = vpack.c.b16 %v1557, %v1552
    %v1608 = vpack.c.b16 %v1558, %v1553
    %v1609 = vpack.c.b16 %v1559, %v1554
    %v1610 = vpack.c.b16 %v1560, %v1555
    %v1611 = vpack.c.b16 %v1566, %v1561
    %v1612 = vpack.c.b16 %v1567, %v1562
    %v1613 = vpack.c.b16 %v1568, %v1563
    %v1614 = vpack.c.b16 %v1569, %v1564
    %v1615 = vpack.c.b16 %v1570, %v1565
    %v1616 = vpack.c.b16 %v1576, %v1571
    %v1617 = vpack.c.b16 %v1577, %v1572
    %v1618 = vpack.c.b16 %v1578, %v1573
    %v1619 = vpack.c.b16 %v1579, %v1574
    %v1620 = vpack.c.b16 %v1580, %v1575
    %1661 = vmatpush.bf16.msra.mxu0 %v1616
    %1662 = vmatpush.bf16.msra.mxu0 %v1611
    %1663 = vmatpush.bf16.msra.mxu0 %v1606
    %1664 = vmatpush.bf16.msra.mxu0 %v1601
    %1665 = vmatpush.bf16.msra.mxu0 %v1596
    %1666 = vmatpush.bf16.msra.mxu0 %v1591
    %1667 = vmatpush.bf16.msra.mxu0 %v1586
    %1668 = vmatpush.bf16.msra.mxu0 %v1581
    %1669 = vmatmul.bf16.gmra.mxu0 %v199
    %v1670 = vpop.f32.mrf.mxu0
    %v1671 = vadd.f32 0.0, %v1670
    %v1672 = vpop.f32.mrf.mxu0
    %v1673 = vadd.f32 0.0, %v1672
    %1674 = vmatmul.bf16.gmra.mxu0 %v200
    %v1675 = vpop.f32.mrf.mxu0
    %v1676 = vadd.f32 0.0, %v1675
    %v1677 = vpop.f32.mrf.mxu0
    %v1678 = vadd.f32 0.0, %v1677
    %1679 = vmatmul.bf16.gmra.mxu0 %v201
    %v1680 = vpop.f32.mrf.mxu0
    %v1681 = vadd.f32 0.0, %v1680
    %v1682 = vpop.f32.mrf.mxu0
    %v1683 = vadd.f32 0.0, %v1682
    %1684 = vmatmul.bf16.gmra.mxu0 %v202
    %v1685 = vpop.f32.mrf.mxu0
    %v1686 = vadd.f32 0.0, %v1685
    %v1687 = vpop.f32.mrf.mxu0
    %v1688 = vadd.f32 0.0, %v1687
    %1689 = vmatmul.bf16.gmra.mxu0 %v203
    %v1690 = vpop.f32.mrf.mxu0
    %v1691 = vadd.f32 0.0, %v1690
    %v1692 = vpop.f32.mrf.mxu0
    %v1693 = vadd.f32 0.0, %v1692
    %1694 = vmatmul.bf16.gmra.mxu0 %v204
    %v1695 = vpop.f32.mrf.mxu0
    %v1696 = vadd.f32 0.0, %v1695
    %v1697 = vpop.f32.mrf.mxu0
    %v1698 = vadd.f32 0.0, %v1697
    %1699 = vmatmul.bf16.gmra.mxu0 %v205
    %v1700 = vpop.f32.mrf.mxu0
    %v1701 = vadd.f32 0.0, %v1700
    %v1702 = vpop.f32.mrf.mxu0
    %v1703 = vadd.f32 0.0, %v1702
    %1704 = vmatmul.bf16.gmra.mxu0 %v206
    %v1705 = vpop.f32.mrf.mxu0
    %v1706 = vadd.f32 0.0, %v1705
    %v1707 = vpop.f32.mrf.mxu0
    %v1708 = vadd.f32 0.0, %v1707
    %1709 = vdwg.mxu0
    %1710 = vmatpush.bf16.msra.mxu0 %v1617
    %1711 = vmatpush.bf16.msra.mxu0 %v1612
    %1712 = vmatpush.bf16.msra.mxu0 %v1607
    %1713 = vmatpush.bf16.msra.mxu0 %v1602
    %1714 = vmatpush.bf16.msra.mxu0 %v1597
    %1715 = vmatpush.bf16.msra.mxu0 %v1592
    %1716 = vmatpush.bf16.msra.mxu0 %v1587
    %1717 = vmatpush.bf16.msra.mxu0 %v1582
    %1718 = vmatmul.bf16.gmra.mxu0 %v199
    %v1719 = vpop.f32.mrf.mxu0
    %v1720 = vadd.f32 0.0, %v1719
    %v1721 = vpop.f32.mrf.mxu0
    %v1722 = vadd.f32 0.0, %v1721
    %1723 = vmatmul.bf16.gmra.mxu0 %v200
    %v1724 = vpop.f32.mrf.mxu0
    %v1725 = vadd.f32 0.0, %v1724
    %v1726 = vpop.f32.mrf.mxu0
    %v1727 = vadd.f32 0.0, %v1726
    %1728 = vmatmul.bf16.gmra.mxu0 %v201
    %v1729 = vpop.f32.mrf.mxu0
    %v1730 = vadd.f32 0.0, %v1729
    %v1731 = vpop.f32.mrf.mxu0
    %v1732 = vadd.f32 0.0, %v1731
    %1733 = vmatmul.bf16.gmra.mxu0 %v202
    %v1734 = vpop.f32.mrf.mxu0
    %v1735 = vadd.f32 0.0, %v1734
    %v1736 = vpop.f32.mrf.mxu0
    %v1737 = vadd.f32 0.0, %v1736
    %1738 = vmatmul.bf16.gmra.mxu0 %v203
    %v1739 = vpop.f32.mrf.mxu0
    %v1740 = vadd.f32 0.0, %v1739
    %v1741 = vpop.f32.mrf.mxu0
    %v1742 = vadd.f32 0.0, %v1741
    %1743 = vmatmul.bf16.gmra.mxu0 %v204
    %v1744 = vpop.f32.mrf.mxu0
    %v1745 = vadd.f32 0.0, %v1744
    %v1746 = vpop.f32.mrf.mxu0
    %v1747 = vadd.f32 0.0, %v1746
    %1748 = vmatmul.bf16.gmra.mxu0 %v205
    %v1749 = vpop.f32.mrf.mxu0
    %v1750 = vadd.f32 0.0, %v1749
    %v1751 = vpop.f32.mrf.mxu0
    %v1752 = vadd.f32 0.0, %v1751
    %1753 = vmatmul.bf16.gmra.mxu0 %v206
    %v1754 = vpop.f32.mrf.mxu0
    %v1755 = vadd.f32 0.0, %v1754
    %v1756 = vpop.f32.mrf.mxu0
    %v1757 = vadd.f32 0.0, %v1756
    %1758 = vdwg.mxu0
    %1759 = vmatpush.bf16.msra.mxu0 %v1618
    %1760 = vmatpush.bf16.msra.mxu0 %v1613
    %1761 = vmatpush.bf16.msra.mxu0 %v1608
    %1762 = vmatpush.bf16.msra.mxu0 %v1603
    %1763 = vmatpush.bf16.msra.mxu0 %v1598
    %1764 = vmatpush.bf16.msra.mxu0 %v1593
    %1765 = vmatpush.bf16.msra.mxu0 %v1588
    %1766 = vmatpush.bf16.msra.mxu0 %v1583
    %1767 = vmatmul.bf16.gmra.mxu0 %v199
    %v1768 = vpop.f32.mrf.mxu0
    %v1769 = vadd.f32 0.0, %v1768
    %v1770 = vpop.f32.mrf.mxu0
    %v1771 = vadd.f32 0.0, %v1770
    %1772 = vmatmul.bf16.gmra.mxu0 %v200
    %v1773 = vpop.f32.mrf.mxu0
    %v1774 = vadd.f32 0.0, %v1773
    %v1775 = vpop.f32.mrf.mxu0
    %v1776 = vadd.f32 0.0, %v1775
    %1777 = vmatmul.bf16.gmra.mxu0 %v201
    %v1778 = vpop.f32.mrf.mxu0
    %v1779 = vadd.f32 0.0, %v1778
    %v1780 = vpop.f32.mrf.mxu0
    %v1781 = vadd.f32 0.0, %v1780
    %1782 = vmatmul.bf16.gmra.mxu0 %v202
    %v1783 = vpop.f32.mrf.mxu0
    %v1784 = vadd.f32 0.0, %v1783
    %v1785 = vpop.f32.mrf.mxu0
    %v1786 = vadd.f32 0.0, %v1785
    %1787 = vmatmul.bf16.gmra.mxu0 %v203
    %v1788 = vpop.f32.mrf.mxu0
    %v1789 = vadd.f32 0.0, %v1788
    %v1790 = vpop.f32.mrf.mxu0
    %v1791 = vadd.f32 0.0, %v1790
    %1792 = vmatmul.bf16.gmra.mxu0 %v204
    %v1793 = vpop.f32.mrf.mxu0
    %v1794 = vadd.f32 0.0, %v1793
    %v1795 = vpop.f32.mrf.mxu0
    %v1796 = vadd.f32 0.0, %v1795
    %1797 = vmatmul.bf16.gmra.mxu0 %v205
    %v1798 = vpop.f32.mrf.mxu0
    %v1799 = vadd.f32 0.0, %v1798
    %v1800 = vpop.f32.mrf.mxu0
    %v1801 = vadd.f32 0.0, %v1800
    %1802 = vmatmul.bf16.gmra.mxu0 %v206
    %v1803 = vpop.f32.mrf.mxu0
    %v1804 = vadd.f32 0.0, %v1803
    %v1805 = vpop.f32.mrf.mxu0
    %v1806 = vadd.f32 0.0, %v1805
    %1807 = vdwg.mxu0
    %1808 = vmatpush.bf16.msra.mxu0 %v1619
    %1809 = vmatpush.bf16.msra.mxu0 %v1614
    %1810 = vmatpush.bf16.msra.mxu0 %v1609
    %1811 = vmatpush.bf16.msra.mxu0 %v1604
    %1812 = vmatpush.bf16.msra.mxu0 %v1599
    %1813 = vmatpush.bf16.msra.mxu0 %v1594
    %1814 = vmatpush.bf16.msra.mxu0 %v1589
    %1815 = vmatpush.bf16.msra.mxu0 %v1584
    %1816 = vmatmul.bf16.gmra.mxu0 %v199
    %v1817 = vpop.f32.mrf.mxu0
    %v1818 = vadd.f32 0.0, %v1817
    %v1819 = vpop.f32.mrf.mxu0
    %v1820 = vadd.f32 0.0, %v1819
    %1821 = vmatmul.bf16.gmra.mxu0 %v200
    %v1822 = vpop.f32.mrf.mxu0
    %v1823 = vadd.f32 0.0, %v1822
    %v1824 = vpop.f32.mrf.mxu0
    %v1825 = vadd.f32 0.0, %v1824
    %1826 = vmatmul.bf16.gmra.mxu0 %v201
    %v1827 = vpop.f32.mrf.mxu0
    %v1828 = vadd.f32 0.0, %v1827
    %v1829 = vpop.f32.mrf.mxu0
    %v1830 = vadd.f32 0.0, %v1829
    %1831 = vmatmul.bf16.gmra.mxu0 %v202
    %v1832 = vpop.f32.mrf.mxu0
    %v1833 = vadd.f32 0.0, %v1832
    %v1834 = vpop.f32.mrf.mxu0
    %v1835 = vadd.f32 0.0, %v1834
    %1836 = vmatmul.bf16.gmra.mxu0 %v203
    %v1837 = vpop.f32.mrf.mxu0
    %v1838 = vadd.f32 0.0, %v1837
    %v1839 = vpop.f32.mrf.mxu0
    %v1840 = vadd.f32 0.0, %v1839
    %1841 = vmatmul.bf16.gmra.mxu0 %v204
    %v1842 = vpop.f32.mrf.mxu0
    %v1843 = vadd.f32 0.0, %v1842
    %v1844 = vpop.f32.mrf.mxu0
    %v1845 = vadd.f32 0.0, %v1844
    %1846 = vmatmul.bf16.gmra.mxu0 %v205
    %v1847 = vpop.f32.mrf.mxu0
    %v1848 = vadd.f32 0.0, %v1847
    %v1849 = vpop.f32.mrf.mxu0
    %v1850 = vadd.f32 0.0, %v1849
    %1851 = vmatmul.bf16.gmra.mxu0 %v206
    %v1852 = vpop.f32.mrf.mxu0
    %v1853 = vadd.f32 0.0, %v1852
    %v1854 = vpop.f32.mrf.mxu0
    %v1855 = vadd.f32 0.0, %v1854
    %1856 = vdwg.mxu0
    %1857 = vmatpush.bf16.msra.mxu0 %v1620
    %1858 = vmatpush.bf16.msra.mxu0 %v1615
    %1859 = vmatpush.bf16.msra.mxu0 %v1610
    %1860 = vmatpush.bf16.msra.mxu0 %v1605
    %1861 = vmatpush.bf16.msra.mxu0 %v1600
    %1862 = vmatpush.bf16.msra.mxu0 %v1595
    %1863 = vmatpush.bf16.msra.mxu0 %v1590
    %1864 = vmatpush.bf16.msra.mxu0 %v1585
    %1865 = vmatmul.bf16.gmra.mxu0 %v199
    %v1866 = vpop.f32.mrf.mxu0
    %v1867 = vadd.f32 0.0, %v1866
    %v1868 = vpop.f32.mrf.mxu0
    %v1869 = vadd.f32 0.0, %v1868
    %1870 = vmatmul.bf16.gmra.mxu0 %v200
    %v1871 = vpop.f32.mrf.mxu0
    %v1872 = vadd.f32 0.0, %v1871
    %v1873 = vpop.f32.mrf.mxu0
    %v1874 = vadd.f32 0.0, %v1873
    %1875 = vmatmul.bf16.gmra.mxu0 %v201
    %v1876 = vpop.f32.mrf.mxu0
    %v1877 = vadd.f32 0.0, %v1876
    %v1878 = vpop.f32.mrf.mxu0
    %v1879 = vadd.f32 0.0, %v1878
    %1880 = vmatmul.bf16.gmra.mxu0 %v202
    %v1881 = vpop.f32.mrf.mxu0
    %v1882 = vadd.f32 0.0, %v1881
    %v1883 = vpop.f32.mrf.mxu0
    %v1884 = vadd.f32 0.0, %v1883
    %1885 = vmatmul.bf16.gmra.mxu0 %v203
    %v1886 = vpop.f32.mrf.mxu0
    %v1887 = vadd.f32 0.0, %v1886
    %v1888 = vpop.f32.mrf.mxu0
    %v1889 = vadd.f32 0.0, %v1888
    %1890 = vmatmul.bf16.gmra.mxu0 %v204
    %v1891 = vpop.f32.mrf.mxu0
    %v1892 = vadd.f32 0.0, %v1891
    %v1893 = vpop.f32.mrf.mxu0
    %v1894 = vadd.f32 0.0, %v1893
    %1895 = vmatmul.bf16.gmra.mxu0 %v205
    %v1896 = vpop.f32.mrf.mxu0
    %v1897 = vadd.f32 0.0, %v1896
    %v1898 = vpop.f32.mrf.mxu0
    %v1899 = vadd.f32 0.0, %v1898
    %1900 = vmatmul.bf16.gmra.mxu0 %v206
    %v1901 = vpop.f32.mrf.mxu0
    %v1902 = vadd.f32 0.0, %v1901
    %v1903 = vpop.f32.mrf.mxu0
    %v1904 = vadd.f32 0.0, %v1903
    %1905 = vdwg.mxu0
    %v1922 = vrot.slane %v1720, 1
    %v1923 = vrot.slane %v1722, 1
    %v1924 = vsel %vm506, %v1922, %v1923
    %v1925 = vrot.slane %v1725, 1
    %v1926 = vrot.slane %v1727, 1
    %v1927 = vsel %vm506, %v1925, %v1926
    %v1928 = vrot.slane %v1730, 1
    %v1929 = vrot.slane %v1732, 1
    %v1930 = vsel %vm506, %v1928, %v1929
    %v1931 = vrot.slane %v1735, 1
    %v1932 = vrot.slane %v1737, 1
    %v1933 = vsel %vm506, %v1931, %v1932
    %v1934 = vrot.slane %v1740, 1
    %v1935 = vrot.slane %v1742, 1
    %v1936 = vsel %vm506, %v1934, %v1935
    %v1937 = vrot.slane %v1745, 1
    %v1938 = vrot.slane %v1747, 1
    %v1939 = vsel %vm506, %v1937, %v1938
    %v1940 = vrot.slane %v1750, 1
    %v1941 = vrot.slane %v1752, 1
    %v1942 = vsel %vm506, %v1940, %v1941
    %v1943 = vrot.slane %v1755, 1
    %v1944 = vrot.slane %v1757, 1
    %v1945 = vsel %vm506, %v1943, %v1944
    %v1962 = vadd.f32 %v1671, %v1924
    %v1963 = vadd.f32 %v1673, %v1923
    %v1964 = vadd.f32 %v1676, %v1927
    %v1965 = vadd.f32 %v1678, %v1926
    %v1966 = vadd.f32 %v1681, %v1930
    %v1967 = vadd.f32 %v1683, %v1929
    %v1968 = vadd.f32 %v1686, %v1933
    %v1969 = vadd.f32 %v1688, %v1932
    %v1970 = vadd.f32 %v1691, %v1936
    %v1971 = vadd.f32 %v1693, %v1935
    %v1972 = vadd.f32 %v1696, %v1939
    %v1973 = vadd.f32 %v1698, %v1938
    %v1974 = vadd.f32 %v1701, %v1942
    %v1975 = vadd.f32 %v1703, %v1941
    %v1976 = vadd.f32 %v1706, %v1945
    %v1977 = vadd.f32 %v1708, %v1944
    %v1994 = vrot.slane %v1769, 2
    %v1995 = vrot.slane %v1771, 2
    %v1996 = vsel %vm579, %v1994, %v1995
    %v1997 = vrot.slane %v1774, 2
    %v1998 = vrot.slane %v1776, 2
    %v1999 = vsel %vm579, %v1997, %v1998
    %v2000 = vrot.slane %v1779, 2
    %v2001 = vrot.slane %v1781, 2
    %v2002 = vsel %vm579, %v2000, %v2001
    %v2003 = vrot.slane %v1784, 2
    %v2004 = vrot.slane %v1786, 2
    %v2005 = vsel %vm579, %v2003, %v2004
    %v2006 = vrot.slane %v1789, 2
    %v2007 = vrot.slane %v1791, 2
    %v2008 = vsel %vm579, %v2006, %v2007
    %v2009 = vrot.slane %v1794, 2
    %v2010 = vrot.slane %v1796, 2
    %v2011 = vsel %vm579, %v2009, %v2010
    %v2012 = vrot.slane %v1799, 2
    %v2013 = vrot.slane %v1801, 2
    %v2014 = vsel %vm579, %v2012, %v2013
    %v2015 = vrot.slane %v1804, 2
    %v2016 = vrot.slane %v1806, 2
    %v2017 = vsel %vm579, %v2015, %v2016
    %v2034 = vadd.f32 %v1962, %v1996
    %v2035 = vadd.f32 %v1963, %v1995
    %v2036 = vadd.f32 %v1964, %v1999
    %v2037 = vadd.f32 %v1965, %v1998
    %v2038 = vadd.f32 %v1966, %v2002
    %v2039 = vadd.f32 %v1967, %v2001
    %v2040 = vadd.f32 %v1968, %v2005
    %v2041 = vadd.f32 %v1969, %v2004
    %v2042 = vadd.f32 %v1970, %v2008
    %v2043 = vadd.f32 %v1971, %v2007
    %v2044 = vadd.f32 %v1972, %v2011
    %v2045 = vadd.f32 %v1973, %v2010
    %v2046 = vadd.f32 %v1974, %v2014
    %v2047 = vadd.f32 %v1975, %v2013
    %v2048 = vadd.f32 %v1976, %v2017
    %v2049 = vadd.f32 %v1977, %v2016
    %v2066 = vrot.slane %v1818, 3
    %v2067 = vrot.slane %v1820, 3
    %v2068 = vsel %vm1266, %v2066, %v2067
    %v2069 = vrot.slane %v1823, 3
    %v2070 = vrot.slane %v1825, 3
    %v2071 = vsel %vm1266, %v2069, %v2070
    %v2072 = vrot.slane %v1828, 3
    %v2073 = vrot.slane %v1830, 3
    %v2074 = vsel %vm1266, %v2072, %v2073
    %v2075 = vrot.slane %v1833, 3
    %v2076 = vrot.slane %v1835, 3
    %v2077 = vsel %vm1266, %v2075, %v2076
    %v2078 = vrot.slane %v1838, 3
    %v2079 = vrot.slane %v1840, 3
    %v2080 = vsel %vm1266, %v2078, %v2079
    %v2081 = vrot.slane %v1843, 3
    %v2082 = vrot.slane %v1845, 3
    %v2083 = vsel %vm1266, %v2081, %v2082
    %v2084 = vrot.slane %v1848, 3
    %v2085 = vrot.slane %v1850, 3
    %v2086 = vsel %vm1266, %v2084, %v2085
    %v2087 = vrot.slane %v1853, 3
    %v2088 = vrot.slane %v1855, 3
    %v2089 = vsel %vm1266, %v2087, %v2088
    %v2106 = vadd.f32 %v2034, %v2068
    %v2107 = vadd.f32 %v2035, %v2067
    %v2108 = vadd.f32 %v2036, %v2071
    %v2109 = vadd.f32 %v2037, %v2070
    %v2110 = vadd.f32 %v2038, %v2074
    %v2111 = vadd.f32 %v2039, %v2073
    %v2112 = vadd.f32 %v2040, %v2077
    %v2113 = vadd.f32 %v2041, %v2076
    %v2114 = vadd.f32 %v2042, %v2080
    %v2115 = vadd.f32 %v2043, %v2079
    %v2116 = vadd.f32 %v2044, %v2083
    %v2117 = vadd.f32 %v2045, %v2082
    %v2118 = vadd.f32 %v2046, %v2086
    %v2119 = vadd.f32 %v2047, %v2085
    %v2120 = vadd.f32 %v2048, %v2089
    %v2121 = vadd.f32 %v2049, %v2088
    %vm2138 = vcmask 1043456
    %v2139 = vrot.slane %v1867, 4
    %v2140 = vrot.slane %v1869, 4
    %v2141 = vsel %vm2138, %v2139, %v2140
    %v2142 = vrot.slane %v1872, 4
    %v2143 = vrot.slane %v1874, 4
    %v2144 = vsel %vm2138, %v2142, %v2143
    %v2145 = vrot.slane %v1877, 4
    %v2146 = vrot.slane %v1879, 4
    %v2147 = vsel %vm2138, %v2145, %v2146
    %v2148 = vrot.slane %v1882, 4
    %v2149 = vrot.slane %v1884, 4
    %v2150 = vsel %vm2138, %v2148, %v2149
    %v2151 = vrot.slane %v1887, 4
    %v2152 = vrot.slane %v1889, 4
    %v2153 = vsel %vm2138, %v2151, %v2152
    %v2154 = vrot.slane %v1892, 4
    %v2155 = vrot.slane %v1894, 4
    %v2156 = vsel %vm2138, %v2154, %v2155
    %v2157 = vrot.slane %v1897, 4
    %v2158 = vrot.slane %v1899, 4
    %v2159 = vsel %vm2138, %v2157, %v2158
    %v2160 = vrot.slane %v1902, 4
    %v2161 = vrot.slane %v1904, 4
    %v2162 = vsel %vm2138, %v2160, %v2161
    %v2179 = vadd.f32 %v2106, %v2141
    %v2180 = vadd.f32 %v2107, %v2140
    %v2181 = vadd.f32 %v2108, %v2144
    %v2182 = vadd.f32 %v2109, %v2143
    %v2183 = vadd.f32 %v2110, %v2147
    %v2184 = vadd.f32 %v2111, %v2146
    %v2185 = vadd.f32 %v2112, %v2150
    %v2186 = vadd.f32 %v2113, %v2149
    %v2187 = vadd.f32 %v2114, %v2153
    %v2188 = vadd.f32 %v2115, %v2152
    %v2189 = vadd.f32 %v2116, %v2156
    %v2190 = vadd.f32 %v2117, %v2155
    %v2191 = vadd.f32 %v2118, %v2159
    %v2192 = vadd.f32 %v2119, %v2158
    %v2193 = vadd.f32 %v2120, %v2162
    %v2194 = vadd.f32 %v2121, %v2161
    %v2195 = vsel %vm2138, %v2180, -inf
    %v2196 = vmax.f32 %v2179, %v2195
    %v2197 = vrot.slane %v2196, 4
    %v2198 = vmax.f32 %v2196, %v2197
    %v2199 = vrot.slane %v2198, 2
    %v2200 = vmax.f32 %v2198, %v2199
    %v2201 = vrot.slane %v2200, 1
    %v2202 = vmax.f32 %v2200, %v2201
    %v2203 = vsel %vm2138, %v2182, -inf
    %v2204 = vmax.f32 %v2181, %v2203
    %v2205 = vrot.slane %v2204, 4
    %v2206 = vmax.f32 %v2204, %v2205
    %v2207 = vrot.slane %v2206, 2
    %v2208 = vmax.f32 %v2206, %v2207
    %v2209 = vrot.slane %v2208, 1
    %v2210 = vmax.f32 %v2208, %v2209
    %v2211 = vsel %vm2138, %v2184, -inf
    %v2212 = vmax.f32 %v2183, %v2211
    %v2213 = vrot.slane %v2212, 4
    %v2214 = vmax.f32 %v2212, %v2213
    %v2215 = vrot.slane %v2214, 2
    %v2216 = vmax.f32 %v2214, %v2215
    %v2217 = vrot.slane %v2216, 1
    %v2218 = vmax.f32 %v2216, %v2217
    %v2219 = vsel %vm2138, %v2186, -inf
    %v2220 = vmax.f32 %v2185, %v2219
    %v2221 = vrot.slane %v2220, 4
    %v2222 = vmax.f32 %v2220, %v2221
    %v2223 = vrot.slane %v2222, 2
    %v2224 = vmax.f32 %v2222, %v2223
    %v2225 = vrot.slane %v2224, 1
    %v2226 = vmax.f32 %v2224, %v2225
    %v2227 = vsel %vm2138, %v2188, -inf
    %v2228 = vmax.f32 %v2187, %v2227
    %v2229 = vrot.slane %v2228, 4
    %v2230 = vmax.f32 %v2228, %v2229
    %v2231 = vrot.slane %v2230, 2
    %v2232 = vmax.f32 %v2230, %v2231
    %v2233 = vrot.slane %v2232, 1
    %v2234 = vmax.f32 %v2232, %v2233
    %v2235 = vsel %vm2138, %v2190, -inf
    %v2236 = vmax.f32 %v2189, %v2235
    %v2237 = vrot.slane %v2236, 4
    %v2238 = vmax.f32 %v2236, %v2237
    %v2239 = vrot.slane %v2238, 2
    %v2240 = vmax.f32 %v2238, %v2239
    %v2241 = vrot.slane %v2240, 1
    %v2242 = vmax.f32 %v2240, %v2241
    %v2243 = vsel %vm2138, %v2192, -inf
    %v2244 = vmax.f32 %v2191, %v2243
    %v2245 = vrot.slane %v2244, 4
    %v2246 = vmax.f32 %v2244, %v2245
    %v2247 = vrot.slane %v2246, 2
    %v2248 = vmax.f32 %v2246, %v2247
    %v2249 = vrot.slane %v2248, 1
    %v2250 = vmax.f32 %v2248, %v2249
    %v2251 = vsel %vm2138, %v2194, -inf
    %v2252 = vmax.f32 %v2193, %v2251
    %v2253 = vrot.slane %v2252, 4
    %v2254 = vmax.f32 %v2252, %v2253
    %v2255 = vrot.slane %v2254, 2
    %v2256 = vmax.f32 %v2254, %v2255
    %v2257 = vrot.slane %v2256, 1
    %v2258 = vmax.f32 %v2256, %v2257
    %v2259 = vld [vmem:[#allocation10 + $0x2] sm:$0x1]
    %v2260 = vperm.slane %v2259, 0
    %v2261 = vadd.f32 %v2202, %v2260
    %v2262 = vadd.f32 %v2210, %v2260
    %v2263 = vadd.f32 %v2218, %v2260
    %v2264 = vadd.f32 %v2226, %v2260
    %v2265 = vadd.f32 %v2234, %v2260
    %v2266 = vadd.f32 %v2242, %v2260
    %v2267 = vadd.f32 %v2250, %v2260
    %v2268 = vadd.f32 %v2258, %v2260
    %v2269 = vmax.f32 %v2261, 0.0
    %v2270 = vmax.f32 %v2262, 0.0
    %v2271 = vmax.f32 %v2263, 0.0
    %v2272 = vmax.f32 %v2264, 0.0
    %v2273 = vmax.f32 %v2265, 0.0
    %v2274 = vmax.f32 %v2266, 0.0
    %v2275 = vmax.f32 %v2267, 0.0
    %v2276 = vmax.f32 %v2268, 0.0
    %v2285 = vrot.slane %v711, 7
    %vm2286 = vcmask 1041409
    %v2287 = vsel %vm2286, %v2285, %v710
    %v2288 = vrot.slane %v712, 6
    %vm2289 = vcmask 1042434
    %v2290 = vsel %vm2289, %v2288, %v2287
    %v2291 = vrot.slane %v713, 5
    %vm2292 = vcmask 1043459
    %v2293 = vsel %vm2292, %v2291, %v2290
    %v2294 = vrot.slane %v714, 4
    %vm2295 = vcmask 1044484
    %v2296 = vsel %vm2295, %v2294, %v2293
    %v2297 = vrot.slane %v715, 3
    %vm2298 = vcmask 1045509
    %v2299 = vsel %vm2298, %v2297, %v2296
    %v2300 = vrot.slane %v716, 2
    %vm2301 = vcmask 1046534
    %v2302 = vsel %vm2301, %v2300, %v2299
    %v2303 = vrot.slane %v717, 1
    %vm2304 = vcmask 1047559
    %v2305 = vsel %vm2304, %v2303, %v2302
    %v2315 = vrot.slane %v1398, 7
    %v2316 = vsel %vm2286, %v2315, %v1397
    %v2317 = vrot.slane %v1399, 6
    %v2318 = vsel %vm2289, %v2317, %v2316
    %v2319 = vrot.slane %v1400, 5
    %v2320 = vsel %vm2292, %v2319, %v2318
    %v2321 = vrot.slane %v1401, 4
    %v2322 = vsel %vm2295, %v2321, %v2320
    %v2323 = vrot.slane %v1402, 3
    %v2324 = vsel %vm2298, %v2323, %v2322
    %v2325 = vrot.slane %v1403, 2
    %v2326 = vsel %vm2301, %v2325, %v2324
    %v2327 = vrot.slane %v1404, 1
    %v2328 = vsel %vm2304, %v2327, %v2326
    %v2338 = vrot.slane %v2270, 7
    %v2339 = vsel %vm2286, %v2338, %v2269
    %v2340 = vrot.slane %v2271, 6
    %v2341 = vsel %vm2289, %v2340, %v2339
    %v2342 = vrot.slane %v2272, 5
    %v2343 = vsel %vm2292, %v2342, %v2341
    %v2344 = vrot.slane %v2273, 4
    %v2345 = vsel %vm2295, %v2344, %v2343
    %v2346 = vrot.slane %v2274, 3
    %v2347 = vsel %vm2298, %v2346, %v2345
    %v2348 = vrot.slane %v2275, 2
    %v2349 = vsel %vm2301, %v2348, %v2347
    %v2350 = vrot.slane %v2276, 1
    %v2351 = vsel %vm2304, %v2350, %v2349
    %v2353 = vpack.c.bf16 %v2305, %v2305
    %v2354 = vpack.c.bf16 %v2328, %v2328
    %v2355 = vpack.c.bf16 %v2351, %v2351
    %v2356 = vld [vmem:[#allocation11] sm:$0xf]
    %v2357 = vld [vmem:[#allocation11 + $0x4] sm:$0xf]
    %v2358 = vld [vmem:[#allocation11 + $0x8] sm:$0xf]
    %v2359 = vld [vmem:[#allocation11 + $0xc] sm:$0xf]
    %v2360 = vld [vmem:[#allocation11 + $0x10] sm:$0xf]
    %v2361 = vld [vmem:[#allocation11 + $0x14] sm:$0xf]
    %v2362 = vld [vmem:[#allocation11 + $0x18] sm:$0xf]
    %v2363 = vld [vmem:[#allocation11 + $0x1c] sm:$0xf]
    %v2364 = vld [vmem:[#allocation11 + $0x20] sm:$0xf]
    %v2365 = vld [vmem:[#allocation11 + $0x24] sm:$0xf]
    %v2366 = vld [vmem:[#allocation11 + $0x28] sm:$0xf]
    %v2367 = vld [vmem:[#allocation11 + $0x2c] sm:$0xf]
    %v2368 = vld [vmem:[#allocation11 + $0x30] sm:$0xf]
    %v2369 = vld [vmem:[#allocation11 + $0x34] sm:$0xf]
    %v2370 = vld [vmem:[#allocation11 + $0x38] sm:$0xf]
    %v2371 = vld [vmem:[#allocation11 + $0x3c] sm:$0xf]
    %v2372 = vld [vmem:[#allocation11 + $0x40] sm:$0xf]
    %v2373 = vld [vmem:[#allocation11 + $0x44] sm:$0xf]
    %v2374 = vld [vmem:[#allocation11 + $0x48] sm:$0xf]
    %v2375 = vld [vmem:[#allocation11 + $0x4c] sm:$0xf]
    %v2376 = vld [vmem:[#allocation11 + $0x50] sm:$0xf]
    %v2377 = vld [vmem:[#allocation11 + $0x54] sm:$0xf]
    %v2378 = vld [vmem:[#allocation11 + $0x58] sm:$0xf]
    %v2379 = vld [vmem:[#allocation11 + $0x5c] sm:$0xf]
    %v2380 = vld [vmem:[#allocation11 + $0x60] sm:$0xf]
    %v2381 = vld [vmem:[#allocation11 + $0x64] sm:$0xf]
    %v2382 = vld [vmem:[#allocation11 + $0x68] sm:$0xf]
    %v2383 = vld [vmem:[#allocation11 + $0x6c] sm:$0xf]
    %v2384 = vld [vmem:[#allocation11 + $0x70] sm:$0xf]
    %v2385 = vld [vmem:[#allocation11 + $0x74] sm:$0xf]
    %v2386 = vld [vmem:[#allocation11 + $0x78] sm:$0xf]
    %v2387 = vld [vmem:[#allocation11 + $0x7c] sm:$0xf]
    %v2388 = vld [vmem:[#allocation11 + $0x80] sm:$0xf]
    %v2389 = vld [vmem:[#allocation11 + $0x84] sm:$0xf]
    %v2390 = vld [vmem:[#allocation11 + $0x88] sm:$0xf]
    %v2391 = vld [vmem:[#allocation11 + $0x8c] sm:$0xf]
    %v2392 = vld [vmem:[#allocation11 + $0x90] sm:$0xf]
    %v2393 = vld [vmem:[#allocation11 + $0x94] sm:$0xf]
    %v2394 = vld [vmem:[#allocation11 + $0x98] sm:$0xf]
    %v2395 = vld [vmem:[#allocation11 + $0x9c] sm:$0xf]
    %v2396 = vld [vmem:[#allocation11 + $0xa0] sm:$0xf]
    %v2397 = vld [vmem:[#allocation11 + $0xa4] sm:$0xf]
    %v2398 = vld [vmem:[#allocation11 + $0xa8] sm:$0xf]
    %v2399 = vld [vmem:[#allocation11 + $0xac] sm:$0xf]
    %v2400 = vld [vmem:[#allocation11 + $0xb0] sm:$0xf]
    %v2401 = vld [vmem:[#allocation11 + $0xb4] sm:$0xf]
    %v2402 = vld [vmem:[#allocation11 + $0xb8] sm:$0xf]
    %v2403 = vld [vmem:[#allocation11 + $0xbc] sm:$0xf]
    %v2404 = vld [vmem:[%s6] sm:$0x1]
    %v2406 = vperm.slane %v2404, 0
    %v2456 = vunpack.c.l.b16 %v2356
    %v2457 = vunpack.c.l.b16 %v2357
    %v2458 = vunpack.c.l.b16 %v2358
    %v2459 = vunpack.c.l.b16 %v2359
    %v2460 = vunpack.c.l.b16 %v2360
    %v2461 = vunpack.c.l.b16 %v2361
    %v2462 = vunpack.c.l.b16 %v2362
    %v2463 = vunpack.c.l.b16 %v2363
    %v2464 = vunpack.c.l.b16 %v2364
    %v2465 = vunpack.c.l.b16 %v2365
    %v2466 = vunpack.c.l.b16 %v2366
    %v2467 = vunpack.c.l.b16 %v2367
    %v2468 = vunpack.c.l.b16 %v2368
    %v2469 = vunpack.c.l.b16 %v2369
    %v2470 = vunpack.c.l.b16 %v2370
    %v2471 = vunpack.c.l.b16 %v2371
    %v2472 = vunpack.c.l.b16 %v2372
    %v2473 = vunpack.c.l.b16 %v2373
    %v2474 = vunpack.c.l.b16 %v2374
    %v2475 = vunpack.c.l.b16 %v2375
    %v2476 = vunpack.c.l.b16 %v2376
    %v2477 = vunpack.c.l.b16 %v2377
    %v2478 = vunpack.c.l.b16 %v2378
    %v2479 = vunpack.c.l.b16 %v2379
    %v2480 = vunpack.c.l.b16 %v2380
    %v2481 = vunpack.c.l.b16 %v2381
    %v2482 = vunpack.c.l.b16 %v2382
    %v2483 = vunpack.c.l.b16 %v2383
    %v2484 = vunpack.c.l.b16 %v2384
    %v2485 = vunpack.c.l.b16 %v2385
    %v2486 = vunpack.c.l.b16 %v2386
    %v2487 = vunpack.c.l.b16 %v2387
    %v2488 = vunpack.c.l.b16 %v2388
    %v2489 = vunpack.c.l.b16 %v2389
    %v2490 = vunpack.c.l.b16 %v2390
    %v2491 = vunpack.c.l.b16 %v2391
    %v2492 = vunpack.c.l.b16 %v2392
    %v2493 = vunpack.c.l.b16 %v2393
    %v2494 = vunpack.c.l.b16 %v2394
    %v2495 = vunpack.c.l.b16 %v2395
    %v2496 = vunpack.c.l.b16 %v2396
    %v2497 = vunpack.c.l.b16 %v2397
    %v2498 = vunpack.c.l.b16 %v2398
    %v2499 = vunpack.c.l.b16 %v2399
    %v2500 = vunpack.c.l.b16 %v2400
    %v2501 = vunpack.c.l.b16 %v2401
    %v2502 = vunpack.c.l.b16 %v2402
    %v2503 = vunpack.c.l.b16 %v2403
    %v2504 = vpack.c.b16 %v2457, %v2456
    %v2505 = vpack.c.b16 %v2459, %v2458
    %v2506 = vpack.c.b16 %v2461, %v2460
    %v2507 = vpack.c.b16 %v2463, %v2462
    %v2508 = vpack.c.b16 %v2465, %v2464
    %v2509 = vpack.c.b16 %v2467, %v2466
    %v2510 = vpack.c.b16 %v2469, %v2468
    %v2511 = vpack.c.b16 %v2471, %v2470
    %v2512 = vpack.c.b16 %v2473, %v2472
    %v2513 = vpack.c.b16 %v2475, %v2474
    %v2514 = vpack.c.b16 %v2477, %v2476
    %v2515 = vpack.c.b16 %v2479, %v2478
    %v2516 = vpack.c.b16 %v2481, %v2480
    %v2517 = vpack.c.b16 %v2483, %v2482
    %v2518 = vpack.c.b16 %v2485, %v2484
    %v2519 = vpack.c.b16 %v2487, %v2486
    %v2520 = vpack.c.b16 %v2489, %v2488
    %v2521 = vpack.c.b16 %v2491, %v2490
    %v2522 = vpack.c.b16 %v2493, %v2492
    %v2523 = vpack.c.b16 %v2495, %v2494
    %v2524 = vpack.c.b16 %v2497, %v2496
    %v2525 = vpack.c.b16 %v2499, %v2498
    %v2526 = vpack.c.b16 %v2501, %v2500
    %v2527 = vpack.c.b16 %v2503, %v2502
    %2552 = vmatpush.bf16.msra.mxu0 %v2511
    %2553 = vmatpush.bf16.msra.mxu0 %v2510
    %2554 = vmatpush.bf16.msra.mxu0 %v2509
    %2555 = vmatpush.bf16.msra.mxu0 %v2508
    %2556 = vmatpush.bf16.msra.mxu0 %v2507
    %2557 = vmatpush.bf16.msra.mxu0 %v2506
    %2558 = vmatpush.bf16.msra.mxu0 %v2505
    %2559 = vmatpush.bf16.msra.mxu0 %v2504
    %2560 = vmatmul.bf16.gmra.mxu0 %v2353
    %v2561 = vpop.f32.mrf.mxu0
    %v2562 = vadd.f32 %v2406, %v2561
    %v2563 = vpop.f32.mrf.mxu0
    %2564 = vdwg.mxu0
    %2565 = vmatpush.bf16.msra.mxu0 %v2519
    %2566 = vmatpush.bf16.msra.mxu0 %v2518
    %2567 = vmatpush.bf16.msra.mxu0 %v2517
    %2568 = vmatpush.bf16.msra.mxu0 %v2516
    %2569 = vmatpush.bf16.msra.mxu0 %v2515
    %2570 = vmatpush.bf16.msra.mxu0 %v2514
    %2571 = vmatpush.bf16.msra.mxu0 %v2513
    %2572 = vmatpush.bf16.msra.mxu0 %v2512
    %2573 = vmatmul.bf16.gmra.mxu0 %v2354
    %v2574 = vpop.f32.mrf.mxu0
    %v2575 = vadd.f32 %v2562, %v2574
    %v2576 = vpop.f32.mrf.mxu0
    %2577 = vdwg.mxu0
    %2578 = vmatpush.bf16.msra.mxu0 %v2527
    %2579 = vmatpush.bf16.msra.mxu0 %v2526
    %2580 = vmatpush.bf16.msra.mxu0 %v2525
    %2581 = vmatpush.bf16.msra.mxu0 %v2524
    %2582 = vmatpush.bf16.msra.mxu0 %v2523
    %2583 = vmatpush.bf16.msra.mxu0 %v2522
    %2584 = vmatpush.bf16.msra.mxu0 %v2521
    %2585 = vmatpush.bf16.msra.mxu0 %v2520
    %2586 = vmatmul.bf16.gmra.mxu0 %v2355
    %v2587 = vpop.f32.mrf.mxu0
    %v2588 = vadd.f32 %v2575, %v2587
    %v2589 = vpop.f32.mrf.mxu0
    %2590 = vdwg.mxu0
    %2591 = vst [vmem:[#allocation13] sm:$0xff] %v2588
    // Predicated region
    $region54: #{tpu_custom_call.1} parent=1 // pred_check
      _
    $region55: #{tpu_custom_call.1} parent=1 // pred_check_branch
      %2593 = sbr.rel (0) target = $region57
    $region56: #{tpu_custom_call.1} parent=1 // pred_region
      %2595 = vsyncadd [#allocation4], 0
      %s2597 = sshll.u32 [#allocation13], 4
      %s2598 = int_to_ptr.vmem [resolvable:$true] %s2597
      %s2599 = sshll.u32 %s7, 4
      %s2600 = int_to_ptr.hbm [resolvable:$true] %s2599
      %2602 = dma.vmem_to_hbm [thread:$0]  %s2598, 128, %s2600, [#allocation4]
    $region57: #{tpu_custom_call.1} parent=1 // pred_fallthru
      _
    // Predicated region
    $region58: #{tpu_custom_call.1} parent=1 // pred_check
      _
    $region59: #{tpu_custom_call.1} parent=1 // pred_check_branch
      %2604 = sbr.rel (0) target = $region61
    $region60: #{tpu_custom_call.1} parent=1 // pred_region
      %2606 = dma.done [#allocation4], 128
    $region61: #{tpu_custom_call.1} parent=1 // pred_fallthru
      _
    %2607 = vsyncpa [#allocation3], 1
    %2608 = vsyncpa [#allocation6], 1
    %2609 = vsyncpa [#allocation9], 1
    %2610 = vsyncpa [#allocation12], 1
    %2611 = vsyncpa [#allocation4], 1

</llo_original>
